<compile_context>
chip_gen: v5e
topology: v5e:2x2
jax: 0.10.0
libtpu: 0.0.40
codegen_flags: <defaults>
</compile_context>

<pallas_src>
import jax
import jax.numpy as jnp
from jax.experimental import pallas as pl
from jax.experimental.pallas import tpu as pltpu


def _track_pos_kernel(enc_gates_ref, pos0_ref, dec_ent_ref,
                      w_in_ref, w_hh_ref, w_head_ref, out_ref):
    M = enc_gates_ref.shape[0]
    B = enc_gates_ref.shape[1]
    Hd = w_hh_ref.shape[0]
    Hor = dec_ent_ref.shape[1]

    # ---- hoisted weight loads (used by every serial step) ----
    w_hh = w_hh_ref[...]                      # [Hd, 4*Hd]
    w_in = w_in_ref[...]                      # [4, 4*Hd]: rows 0..2 = W_ih^T, row 3 = bias
    w_yaw = w_in[0:1, :]                      # [1, 4*Hd]
    w_pitch = w_in[1:2, :]
    w_ent = w_in[2:3, :]
    bias = w_in[3:4, :]
    w_head_all = w_head_ref[...]              # [Hd+1, 4]: rows 0..Hd-1 = [W_mot^T | W_dir^T]
    w_head = w_head_all[0:Hd, :]              # [Hd, 4]
    b_head = w_head_all[Hd:Hd + 1, :]         # [1, 4]

    def cell(gates, c):
        # Two full-width transcendentals instead of 4 per-gate ones.
        sig = jax.nn.sigmoid(gates)           # [B, 4*Hd]
        tah = jnp.tanh(gates)                 # [B, 4*Hd]
        i_g = sig[:, 0:Hd]
        f_g = sig[:, Hd:2 * Hd]
        g_g = tah[:, 2 * Hd:3 * Hd]
        o_g = sig[:, 3 * Hd:4 * Hd]
        c_new = f_g * c + i_g * g_g
        h_new = o_g * jnp.tanh(c_new)
        return h_new, c_new

    h = jnp.zeros((B, Hd), jnp.float32)
    c = jnp.zeros((B, Hd), jnp.float32)

    # ---------------- encoder (fully unrolled) ----------------
    # Input projection was precomputed outside; only h @ W_hh^T is on the chain.
    for t in range(M):
        gates = enc_gates_ref[t] + jnp.dot(h, w_hh,
                                           preferred_element_type=jnp.float32)
        h, c = cell(gates, c)

    # ---------------- autoregressive decoder (fully unrolled) ----------------
    pos0 = pos0_ref[...]                      # [B, 2]
    yaw = pos0[:, 0:1]
    pitch = pos0[:, 1:2]
    dec_ent = dec_ent_ref[...]                # [B, Hor]

    # Entropy + bias input contribution per step (independent of the recurrence).
    ent_bias = [dec_ent[:, i:i + 1] * w_ent + bias for i in range(Hor)]

    out_cols = []
    for i in range(Hor):
        # Input contribution via VPU broadcast FMAs (no concat, no K=3 matmul).
        gin = yaw * w_yaw + pitch * w_pitch + ent_bias[i]
        gates = gin + jnp.dot(h, w_hh, preferred_element_type=jnp.float32)
        h, c = cell(gates, c)

        # Fused [mot | dir] head: one matmul per step.
        head = jnp.dot(h, w_head, preferred_element_type=jnp.float32) + b_head  # [B, 4]
        m_yaw = head[:, 0:1] * head[:, 2:3]
        m_pitch = head[:, 1:2] * head[:, 3:4]

        yaw_wo = yaw + m_yaw
        pitch_wo = pitch + m_pitch

        above = pitch_wo > 1.0
        below = pitch_wo < 0.0
        pitch = jnp.where(above, 1.0 - (pitch_wo - 1.0),
                          jnp.where(below, -pitch_wo, pitch_wo))
        yaw_raw = jnp.where(jnp.logical_or(above, below), yaw_wo - 0.5, yaw_wo)
        # torch.fmod(x, 1.0) == x - trunc(x)  (result keeps the sign of x)
        trunc_y = jnp.where(yaw_raw >= 0.0, jnp.floor(yaw_raw), jnp.ceil(yaw_raw))
        yaw = yaw_raw - trunc_y

        out_cols.append(yaw)
        out_cols.append(pitch)

    # Single store of the whole horizon: columns ordered yaw0, pitch0, yaw1, ...
    out_ref[...] = jnp.concatenate(out_cols, axis=-1)    # [B, 2*Hor]


def init_params(key, hidden_size, lstm_input_size=3):
    """Deterministic synthetic parameters matching the nn.Module's shapes."""
    ks = jax.random.split(key, 8)
    s = 0.1
    # nn.LSTM(input_size=3, hidden_size)   (gate order i, f, g, o)
    w_ih = jax.random.normal(ks[0], (4 * hidden_size, lstm_input_size), jnp.float32) * s
    w_hh = jax.random.normal(ks[1], (4 * hidden_size, hidden_size), jnp.float32) * s
    b_ih = jax.random.normal(ks[2], (4 * hidden_size,), jnp.float32) * s
    b_hh = jax.random.normal(ks[3], (4 * hidden_size,), jnp.float32) * s
    # nn.Linear(hidden_size, 2) x2
    w_mot = jax.random.normal(ks[4], (2, hidden_size), jnp.float32) * s
    b_mot = jax.random.normal(ks[5], (2,), jnp.float32) * s
    w_dir = jax.random.normal(ks[6], (2, hidden_size), jnp.float32) * s
    b_dir = jax.random.normal(ks[7], (2,), jnp.float32) * s
    return dict(w_ih=w_ih, w_hh=w_hh, b_ih=b_ih, b_hh=b_hh,
                w_mot=w_mot, b_mot=b_mot, w_dir=w_dir, b_dir=b_dir)


def track_pos_forward(encoder_pos_inputs, encoder_ent,
                      decoder_pos_inputs, decoder_ent, params):
    """Batch-first API matching the PyTorch module.

    encoder_pos_inputs: [B, M, 2]   encoder_ent: [B, M]
    decoder_pos_inputs: [B, 1, 2]   decoder_ent: [B, H]
    returns           : [B, H, 2]
    """
    B, M, _ = encoder_pos_inputs.shape
    H_WINDOW = decoder_ent.shape[1]
    Hd = params["w_hh"].shape[1]
    f32 = jnp.float32

    w_ih_t = params["w_ih"].T.astype(f32)                           # [3, 4*Hd]
    w_hh_t = params["w_hh"].T.astype(f32)                           # [Hd, 4*Hd]
    b_comb = (params["b_ih"] + params["b_hh"]).astype(f32)[None, :]  # [1, 4*Hd]

    # Encoder input projection for all M steps as one batched matmul (time-major).
    enc_x = jnp.concatenate([encoder_pos_inputs.astype(f32),
                             encoder_ent.astype(f32)[:, :, None]], axis=2)  # [B, M, 3]
    enc_gates = jnp.einsum('bmi,ig->mbg', enc_x, w_ih_t) + b_comb           # [M, B, 4*Hd]

    pos0 = decoder_pos_inputs[:, 0, :].astype(f32)                  # [B, 2]
    dec_ent = decoder_ent.astype(f32)                               # [B, H]

    # Packed small weights: [W_ih^T ; b_ih+b_hh] and [W_mot^T | W_dir^T ; b_mot|b_dir]
    w_in = jnp.concatenate([w_ih_t, b_comb], axis=0)                # [4, 4*Hd]
    w_head = jnp.concatenate(
        [jnp.concatenate([params["w_mot"].T, params["w_dir"].T], axis=1).astype(f32),
         jnp.concatenate([params["b_mot"], params["b_dir"]]).astype(f32)[None, :]],
        axis=0)                                                     # [Hd+1, 4]

    vmem = pl.BlockSpec(memory_space=pltpu.MemorySpace.VMEM)
    out2d = pl.pallas_call(
        _track_pos_kernel,
        out_shape=jax.ShapeDtypeStruct((B, 2 * H_WINDOW), f32),
        in_specs=[vmem] * 6,
        out_specs=vmem,
    )(enc_gates, pos0, dec_ent, w_in, w_hh_t, w_head)

    return out2d.reshape(B, H_WINDOW, 2)


def _reference_forward(encoder_pos_inputs, encoder_ent,
                       decoder_pos_inputs, decoder_ent, params):
    """Pure-JAX reference mirroring the PyTorch module (for a sanity check)."""
    f32 = jnp.float32
    w_ih = params["w_ih"].astype(f32)
    w_hh = params["w_hh"].astype(f32)
    b = (params["b_ih"] + params["b_hh"]).astype(f32)
    Hd = w_hh.shape[1]

    def cell(x, h, c):
        g = x @ w_ih.T + h @ w_hh.T + b
        i = jax.nn.sigmoid(g[:, 0:Hd])
        f = jax.nn.sigmoid(g[:, Hd:2 * Hd])
        gg = jnp.tanh(g[:, 2 * Hd:3 * Hd])
        o = jax.nn.sigmoid(g[:, 3 * Hd:4 * Hd])
        c = f * c + i * gg
        h = o * jnp.tanh(c)
        return h, c

    B, M, _ = encoder_pos_inputs.shape
    Hor = decoder_ent.shape[1]
    enc_x = jnp.concatenate([encoder_pos_inputs.astype(f32),
                             encoder_ent.astype(f32)[:, :, None]], axis=2)
    h = jnp.zeros((B, Hd), f32)
    c = jnp.zeros((B, Hd), f32)
    for t in range(M):
        h, c = cell(enc_x[:, t, :], h, c)

    pos = decoder_pos_inputs[:, 0, :].astype(f32)
    outs = []
    for i in range(Hor):
        x = jnp.concatenate([pos, decoder_ent[:, i:i + 1].astype(f32)], axis=1)
        h, c = cell(x, h, c)
        delta = h @ params["w_mot"].T.astype(f32) + params["b_mot"].astype(f32)
        ddir = h @ params["w_dir"].T.astype(f32) + params["b_dir"].astype(f32)
        motion = delta * ddir
        yaw_wo = pos[:, 0:1] + motion[:, 0:1]
        pitch_wo = pos[:, 1:2] + motion[:, 1:2]
        above = pitch_wo > 1.0
        below = pitch_wo < 0.0
        pitch = jnp.where(above, 1.0 - (pitch_wo - 1.0),
                          jnp.where(below, -pitch_wo, pitch_wo))
        yaw_raw = jnp.where(above | below, yaw_wo - 0.5, yaw_wo)
        yaw = yaw_raw - jnp.where(yaw_raw >= 0.0, jnp.floor(yaw_raw), jnp.ceil(yaw_raw))
        pos = jnp.concatenate([yaw, pitch], axis=1)
        outs.append(pos[:, None, :])
    return jnp.concatenate(outs, axis=1)


if __name__ == "__main__":
    B = 2
    M_WINDOW = 8
    H_WINDOW = 4
    HIDDEN = 32

    key = jax.random.PRNGKey(0)
    k_in, k_par = jax.random.split(key)
    k1, k2, k3, k4 = jax.random.split(k_in, 4)

    encoder_pos_inputs = jax.random.uniform(k1, (B, M_WINDOW, 2), jnp.float32)
    encoder_ent = jax.random.uniform(k2, (B, M_WINDOW), jnp.float32)
    decoder_pos_inputs = jax.random.uniform(k3, (B, 1, 2), jnp.float32)
    decoder_ent = jax.random.uniform(k4, (B, H_WINDOW), jnp.float32)

    params = init_params(k_par, HIDDEN, lstm_input_size=3)

    fwd = jax.jit(track_pos_forward)
    out = fwd(encoder_pos_inputs, encoder_ent,
              decoder_pos_inputs, decoder_ent, params)
    out = jax.block_until_ready(out)

    assert out.shape == (B, H_WINDOW, 2), out.shape
    assert out.dtype == jnp.float32

    ref = _reference_forward(encoder_pos_inputs, encoder_ent,
                             decoder_pos_inputs, decoder_ent, params)
    ref = jax.block_until_ready(ref)
    max_err = float(jnp.max(jnp.abs(out - ref)))
    assert max_err < 1e-2, f"kernel vs reference mismatch: {max_err}"

    print("KERNEL_OK")
</pallas_src>

<mosaic_0001>
module attributes {stable_mosaic.version = 11 : i64} {
  func.func @_track_pos_kernel(%arg0: memref<8x2x128xf32, #tpu.memory_space<vmem>>, %arg1: memref<2x2xf32, #tpu.memory_space<vmem>>, %arg2: memref<2x4xf32, #tpu.memory_space<vmem>>, %arg3: memref<4x128xf32, #tpu.memory_space<vmem>>, %arg4: memref<32x128xf32, #tpu.memory_space<vmem>>, %arg5: memref<33x4xf32, #tpu.memory_space<vmem>>, %arg6: memref<2x8xf32, #tpu.memory_space<vmem>>) attributes {dimension_semantics = [], scalar_prefetch = 0 : i64, scratch_operands = 0 : i64, tpu.core_type = #tpu.core_type<tc>} {
    %c0 = arith.constant 0 : index
    %c0_0 = arith.constant 0 : index
    %0 = vector.load %arg4[%c0, %c0_0] : memref<32x128xf32, #tpu.memory_space<vmem>>, vector<32x128xf32>
    %c0_1 = arith.constant 0 : index
    %c0_2 = arith.constant 0 : index
    %1 = vector.load %arg3[%c0_1, %c0_2] : memref<4x128xf32, #tpu.memory_space<vmem>>, vector<4x128xf32>
    %2 = vector.extract_strided_slice %1 {offsets = [0, 0], sizes = [1, 128], strides = [1, 1]} : vector<4x128xf32> to vector<1x128xf32>
    %3 = vector.extract_strided_slice %1 {offsets = [1, 0], sizes = [1, 128], strides = [1, 1]} : vector<4x128xf32> to vector<1x128xf32>
    %4 = vector.extract_strided_slice %1 {offsets = [2, 0], sizes = [1, 128], strides = [1, 1]} : vector<4x128xf32> to vector<1x128xf32>
    %5 = vector.extract_strided_slice %1 {offsets = [3, 0], sizes = [1, 128], strides = [1, 1]} : vector<4x128xf32> to vector<1x128xf32>
    %c0_3 = arith.constant 0 : index
    %c0_4 = arith.constant 0 : index
    %6 = vector.load %arg5[%c0_3, %c0_4] : memref<33x4xf32, #tpu.memory_space<vmem>>, vector<33x4xf32>
    %7 = vector.extract_strided_slice %6 {offsets = [0, 0], sizes = [32, 4], strides = [1, 1]} : vector<33x4xf32> to vector<32x4xf32>
    %8 = vector.extract_strided_slice %6 {offsets = [32, 0], sizes = [1, 4], strides = [1, 1]} : vector<33x4xf32> to vector<1x4xf32>
    %cst = arith.constant 0.000000e+00 : f32
    %9 = vector.broadcast %cst : f32 to vector<2x32xf32>
    %cst_5 = arith.constant 0.000000e+00 : f32
    %10 = vector.broadcast %cst_5 : f32 to vector<2x32xf32>
    %c0_6 = arith.constant 0 : index
    %c0_7 = arith.constant 0 : index
    %c0_8 = arith.constant 0 : index
    %11 = vector.load %arg0[%c0_6, %c0_7, %c0_8] : memref<8x2x128xf32, #tpu.memory_space<vmem>>, vector<1x2x128xf32>
    %12 = vector.shape_cast %11 : vector<1x2x128xf32> to vector<2x128xf32>
    %cst_9 = arith.constant dense<0.000000e+00> : vector<2x128xf32>
    %13 = tpu.matmul %9, %0, %cst_9 {dimension_numbers = #tpu.dot_dimension_numbers<[1], [0], [0], [1], [0, 0, 1, 1], [], []>} : vector<2x32xf32>, vector<32x128xf32>, vector<2x128xf32> -> vector<2x128xf32>
    %14 = arith.addf %12, %13 : vector<2x128xf32>
    %15 = arith.negf %14 : vector<2x128xf32>
    %16 = math.exp %15 : vector<2x128xf32>
    %cst_10 = arith.constant 1.000000e+00 : f32
    %17 = vector.broadcast %cst_10 : f32 to vector<2x128xf32>
    %18 = arith.addf %17, %16 : vector<2x128xf32>
    %19 = arith.divf %17, %18 : vector<2x128xf32>
    %20 = math.tanh %14 : vector<2x128xf32>
    %21 = vector.extract_strided_slice %19 {offsets = [0, 0], sizes = [2, 32], strides = [1, 1]} : vector<2x128xf32> to vector<2x32xf32>
    %22 = vector.extract_strided_slice %19 {offsets = [0, 32], sizes = [2, 32], strides = [1, 1]} : vector<2x128xf32> to vector<2x32xf32>
    %23 = vector.extract_strided_slice %20 {offsets = [0, 64], sizes = [2, 32], strides = [1, 1]} : vector<2x128xf32> to vector<2x32xf32>
    %24 = vector.extract_strided_slice %19 {offsets = [0, 96], sizes = [2, 32], strides = [1, 1]} : vector<2x128xf32> to vector<2x32xf32>
    %25 = arith.mulf %22, %10 : vector<2x32xf32>
    %26 = arith.mulf %21, %23 : vector<2x32xf32>
    %27 = arith.addf %25, %26 : vector<2x32xf32>
    %28 = math.tanh %27 : vector<2x32xf32>
    %29 = arith.mulf %24, %28 : vector<2x32xf32>
    %c1 = arith.constant 1 : index
    %c0_11 = arith.constant 0 : index
    %c0_12 = arith.constant 0 : index
    %30 = vector.load %arg0[%c1, %c0_11, %c0_12] : memref<8x2x128xf32, #tpu.memory_space<vmem>>, vector<1x2x128xf32>
    %31 = vector.shape_cast %30 : vector<1x2x128xf32> to vector<2x128xf32>
    %cst_13 = arith.constant dense<0.000000e+00> : vector<2x128xf32>
    %32 = tpu.matmul %29, %0, %cst_13 {dimension_numbers = #tpu.dot_dimension_numbers<[1], [0], [0], [1], [0, 0, 1, 1], [], []>} : vector<2x32xf32>, vector<32x128xf32>, vector<2x128xf32> -> vector<2x128xf32>
    %33 = arith.addf %31, %32 : vector<2x128xf32>
    %34 = arith.negf %33 : vector<2x128xf32>
    %35 = math.exp %34 : vector<2x128xf32>
    %cst_14 = arith.constant 1.000000e+00 : f32
    %36 = vector.broadcast %cst_14 : f32 to vector<2x128xf32>
    %37 = arith.addf %36, %35 : vector<2x128xf32>
    %38 = arith.divf %36, %37 : vector<2x128xf32>
    %39 = math.tanh %33 : vector<2x128xf32>
    %40 = vector.extract_strided_slice %38 {offsets = [0, 0], sizes = [2, 32], strides = [1, 1]} : vector<2x128xf32> to vector<2x32xf32>
    %41 = vector.extract_strided_slice %38 {offsets = [0, 32], sizes = [2, 32], strides = [1, 1]} : vector<2x128xf32> to vector<2x32xf32>
    %42 = vector.extract_strided_slice %39 {offsets = [0, 64], sizes = [2, 32], strides = [1, 1]} : vector<2x128xf32> to vector<2x32xf32>
    %43 = vector.extract_strided_slice %38 {offsets = [0, 96], sizes = [2, 32], strides = [1, 1]} : vector<2x128xf32> to vector<2x32xf32>
    %44 = arith.mulf %41, %27 : vector<2x32xf32>
    %45 = arith.mulf %40, %42 : vector<2x32xf32>
    %46 = arith.addf %44, %45 : vector<2x32xf32>
    %47 = math.tanh %46 : vector<2x32xf32>
    %48 = arith.mulf %43, %47 : vector<2x32xf32>
    %c2 = arith.constant 2 : index
    %c0_15 = arith.constant 0 : index
    %c0_16 = arith.constant 0 : index
    %49 = vector.load %arg0[%c2, %c0_15, %c0_16] : memref<8x2x128xf32, #tpu.memory_space<vmem>>, vector<1x2x128xf32>
    %50 = vector.shape_cast %49 : vector<1x2x128xf32> to vector<2x128xf32>
    %cst_17 = arith.constant dense<0.000000e+00> : vector<2x128xf32>
    %51 = tpu.matmul %48, %0, %cst_17 {dimension_numbers = #tpu.dot_dimension_numbers<[1], [0], [0], [1], [0, 0, 1, 1], [], []>} : vector<2x32xf32>, vector<32x128xf32>, vector<2x128xf32> -> vector<2x128xf32>
    %52 = arith.addf %50, %51 : vector<2x128xf32>
    %53 = arith.negf %52 : vector<2x128xf32>
    %54 = math.exp %53 : vector<2x128xf32>
    %cst_18 = arith.constant 1.000000e+00 : f32
    %55 = vector.broadcast %cst_18 : f32 to vector<2x128xf32>
    %56 = arith.addf %55, %54 : vector<2x128xf32>
    %57 = arith.divf %55, %56 : vector<2x128xf32>
    %58 = math.tanh %52 : vector<2x128xf32>
    %59 = vector.extract_strided_slice %57 {offsets = [0, 0], sizes = [2, 32], strides = [1, 1]} : vector<2x128xf32> to vector<2x32xf32>
    %60 = vector.extract_strided_slice %57 {offsets = [0, 32], sizes = [2, 32], strides = [1, 1]} : vector<2x128xf32> to vector<2x32xf32>
    %61 = vector.extract_strided_slice %58 {offsets = [0, 64], sizes = [2, 32], strides = [1, 1]} : vector<2x128xf32> to vector<2x32xf32>
    %62 = vector.extract_strided_slice %57 {offsets = [0, 96], sizes = [2, 32], strides = [1, 1]} : vector<2x128xf32> to vector<2x32xf32>
    %63 = arith.mulf %60, %46 : vector<2x32xf32>
    %64 = arith.mulf %59, %61 : vector<2x32xf32>
    %65 = arith.addf %63, %64 : vector<2x32xf32>
    %66 = math.tanh %65 : vector<2x32xf32>
    %67 = arith.mulf %62, %66 : vector<2x32xf32>
    %c3 = arith.constant 3 : index
    %c0_19 = arith.constant 0 : index
    %c0_20 = arith.constant 0 : index
    %68 = vector.load %arg0[%c3, %c0_19, %c0_20] : memref<8x2x128xf32, #tpu.memory_space<vmem>>, vector<1x2x128xf32>
    %69 = vector.shape_cast %68 : vector<1x2x128xf32> to vector<2x128xf32>
    %cst_21 = arith.constant dense<0.000000e+00> : vector<2x128xf32>
    %70 = tpu.matmul %67, %0, %cst_21 {dimension_numbers = #tpu.dot_dimension_numbers<[1], [0], [0], [1], [0, 0, 1, 1], [], []>} : vector<2x32xf32>, vector<32x128xf32>, vector<2x128xf32> -> vector<2x128xf32>
    %71 = arith.addf %69, %70 : vector<2x128xf32>
    %72 = arith.negf %71 : vector<2x128xf32>
    %73 = math.exp %72 : vector<2x128xf32>
    %cst_22 = arith.constant 1.000000e+00 : f32
    %74 = vector.broadcast %cst_22 : f32 to vector<2x128xf32>
    %75 = arith.addf %74, %73 : vector<2x128xf32>
    %76 = arith.divf %74, %75 : vector<2x128xf32>
    %77 = math.tanh %71 : vector<2x128xf32>
    %78 = vector.extract_strided_slice %76 {offsets = [0, 0], sizes = [2, 32], strides = [1, 1]} : vector<2x128xf32> to vector<2x32xf32>
    %79 = vector.extract_strided_slice %76 {offsets = [0, 32], sizes = [2, 32], strides = [1, 1]} : vector<2x128xf32> to vector<2x32xf32>
    %80 = vector.extract_strided_slice %77 {offsets = [0, 64], sizes = [2, 32], strides = [1, 1]} : vector<2x128xf32> to vector<2x32xf32>
    %81 = vector.extract_strided_slice %76 {offsets = [0, 96], sizes = [2, 32], strides = [1, 1]} : vector<2x128xf32> to vector<2x32xf32>
    %82 = arith.mulf %79, %65 : vector<2x32xf32>
    %83 = arith.mulf %78, %80 : vector<2x32xf32>
    %84 = arith.addf %82, %83 : vector<2x32xf32>
    %85 = math.tanh %84 : vector<2x32xf32>
    %86 = arith.mulf %81, %85 : vector<2x32xf32>
    %c4 = arith.constant 4 : index
    %c0_23 = arith.constant 0 : index
    %c0_24 = arith.constant 0 : index
    %87 = vector.load %arg0[%c4, %c0_23, %c0_24] : memref<8x2x128xf32, #tpu.memory_space<vmem>>, vector<1x2x128xf32>
    %88 = vector.shape_cast %87 : vector<1x2x128xf32> to vector<2x128xf32>
    %cst_25 = arith.constant dense<0.000000e+00> : vector<2x128xf32>
    %89 = tpu.matmul %86, %0, %cst_25 {dimension_numbers = #tpu.dot_dimension_numbers<[1], [0], [0], [1], [0, 0, 1, 1], [], []>} : vector<2x32xf32>, vector<32x128xf32>, vector<2x128xf32> -> vector<2x128xf32>
    %90 = arith.addf %88, %89 : vector<2x128xf32>
    %91 = arith.negf %90 : vector<2x128xf32>
    %92 = math.exp %91 : vector<2x128xf32>
    %cst_26 = arith.constant 1.000000e+00 : f32
    %93 = vector.broadcast %cst_26 : f32 to vector<2x128xf32>
    %94 = arith.addf %93, %92 : vector<2x128xf32>
    %95 = arith.divf %93, %94 : vector<2x128xf32>
    %96 = math.tanh %90 : vector<2x128xf32>
    %97 = vector.extract_strided_slice %95 {offsets = [0, 0], sizes = [2, 32], strides = [1, 1]} : vector<2x128xf32> to vector<2x32xf32>
    %98 = vector.extract_strided_slice %95 {offsets = [0, 32], sizes = [2, 32], strides = [1, 1]} : vector<2x128xf32> to vector<2x32xf32>
    %99 = vector.extract_strided_slice %96 {offsets = [0, 64], sizes = [2, 32], strides = [1, 1]} : vector<2x128xf32> to vector<2x32xf32>
    %100 = vector.extract_strided_slice %95 {offsets = [0, 96], sizes = [2, 32], strides = [1, 1]} : vector<2x128xf32> to vector<2x32xf32>
    %101 = arith.mulf %98, %84 : vector<2x32xf32>
    %102 = arith.mulf %97, %99 : vector<2x32xf32>
    %103 = arith.addf %101, %102 : vector<2x32xf32>
    %104 = math.tanh %103 : vector<2x32xf32>
    %105 = arith.mulf %100, %104 : vector<2x32xf32>
    %c5 = arith.constant 5 : index
    %c0_27 = arith.constant 0 : index
    %c0_28 = arith.constant 0 : index
    %106 = vector.load %arg0[%c5, %c0_27, %c0_28] : memref<8x2x128xf32, #tpu.memory_space<vmem>>, vector<1x2x128xf32>
    %107 = vector.shape_cast %106 : vector<1x2x128xf32> to vector<2x128xf32>
    %cst_29 = arith.constant dense<0.000000e+00> : vector<2x128xf32>
    %108 = tpu.matmul %105, %0, %cst_29 {dimension_numbers = #tpu.dot_dimension_numbers<[1], [0], [0], [1], [0, 0, 1, 1], [], []>} : vector<2x32xf32>, vector<32x128xf32>, vector<2x128xf32> -> vector<2x128xf32>
    %109 = arith.addf %107, %108 : vector<2x128xf32>
    %110 = arith.negf %109 : vector<2x128xf32>
    %111 = math.exp %110 : vector<2x128xf32>
    %cst_30 = arith.constant 1.000000e+00 : f32
    %112 = vector.broadcast %cst_30 : f32 to vector<2x128xf32>
    %113 = arith.addf %112, %111 : vector<2x128xf32>
    %114 = arith.divf %112, %113 : vector<2x128xf32>
    %115 = math.tanh %109 : vector<2x128xf32>
    %116 = vector.extract_strided_slice %114 {offsets = [0, 0], sizes = [2, 32], strides = [1, 1]} : vector<2x128xf32> to vector<2x32xf32>
    %117 = vector.extract_strided_slice %114 {offsets = [0, 32], sizes = [2, 32], strides = [1, 1]} : vector<2x128xf32> to vector<2x32xf32>
    %118 = vector.extract_strided_slice %115 {offsets = [0, 64], sizes = [2, 32], strides = [1, 1]} : vector<2x128xf32> to vector<2x32xf32>
    %119 = vector.extract_strided_slice %114 {offsets = [0, 96], sizes = [2, 32], strides = [1, 1]} : vector<2x128xf32> to vector<2x32xf32>
    %120 = arith.mulf %117, %103 : vector<2x32xf32>
    %121 = arith.mulf %116, %118 : vector<2x32xf32>
    %122 = arith.addf %120, %121 : vector<2x32xf32>
    %123 = math.tanh %122 : vector<2x32xf32>
    %124 = arith.mulf %119, %123 : vector<2x32xf32>
    %c6 = arith.constant 6 : index
    %c0_31 = arith.constant 0 : index
    %c0_32 = arith.constant 0 : index
    %125 = vector.load %arg0[%c6, %c0_31, %c0_32] : memref<8x2x128xf32, #tpu.memory_space<vmem>>, vector<1x2x128xf32>
    %126 = vector.shape_cast %125 : vector<1x2x128xf32> to vector<2x128xf32>
    %cst_33 = arith.constant dense<0.000000e+00> : vector<2x128xf32>
    %127 = tpu.matmul %124, %0, %cst_33 {dimension_numbers = #tpu.dot_dimension_numbers<[1], [0], [0], [1], [0, 0, 1, 1], [], []>} : vector<2x32xf32>, vector<32x128xf32>, vector<2x128xf32> -> vector<2x128xf32>
    %128 = arith.addf %126, %127 : vector<2x128xf32>
    %129 = arith.negf %128 : vector<2x128xf32>
    %130 = math.exp %129 : vector<2x128xf32>
    %cst_34 = arith.constant 1.000000e+00 : f32
    %131 = vector.broadcast %cst_34 : f32 to vector<2x128xf32>
    %132 = arith.addf %131, %130 : vector<2x128xf32>
    %133 = arith.divf %131, %132 : vector<2x128xf32>
    %134 = math.tanh %128 : vector<2x128xf32>
    %135 = vector.extract_strided_slice %133 {offsets = [0, 0], sizes = [2, 32], strides = [1, 1]} : vector<2x128xf32> to vector<2x32xf32>
    %136 = vector.extract_strided_slice %133 {offsets = [0, 32], sizes = [2, 32], strides = [1, 1]} : vector<2x128xf32> to vector<2x32xf32>
    %137 = vector.extract_strided_slice %134 {offsets = [0, 64], sizes = [2, 32], strides = [1, 1]} : vector<2x128xf32> to vector<2x32xf32>
    %138 = vector.extract_strided_slice %133 {offsets = [0, 96], sizes = [2, 32], strides = [1, 1]} : vector<2x128xf32> to vector<2x32xf32>
    %139 = arith.mulf %136, %122 : vector<2x32xf32>
    %140 = arith.mulf %135, %137 : vector<2x32xf32>
    %141 = arith.addf %139, %140 : vector<2x32xf32>
    %142 = math.tanh %141 : vector<2x32xf32>
    %143 = arith.mulf %138, %142 : vector<2x32xf32>
    %c7 = arith.constant 7 : index
    %c0_35 = arith.constant 0 : index
    %c0_36 = arith.constant 0 : index
    %144 = vector.load %arg0[%c7, %c0_35, %c0_36] : memref<8x2x128xf32, #tpu.memory_space<vmem>>, vector<1x2x128xf32>
    %145 = vector.shape_cast %144 : vector<1x2x128xf32> to vector<2x128xf32>
    %cst_37 = arith.constant dense<0.000000e+00> : vector<2x128xf32>
    %146 = tpu.matmul %143, %0, %cst_37 {dimension_numbers = #tpu.dot_dimension_numbers<[1], [0], [0], [1], [0, 0, 1, 1], [], []>} : vector<2x32xf32>, vector<32x128xf32>, vector<2x128xf32> -> vector<2x128xf32>
    %147 = arith.addf %145, %146 : vector<2x128xf32>
    %148 = arith.negf %147 : vector<2x128xf32>
    %149 = math.exp %148 : vector<2x128xf32>
    %cst_38 = arith.constant 1.000000e+00 : f32
    %150 = vector.broadcast %cst_38 : f32 to vector<2x128xf32>
    %151 = arith.addf %150, %149 : vector<2x128xf32>
    %152 = arith.divf %150, %151 : vector<2x128xf32>
    %153 = math.tanh %147 : vector<2x128xf32>
    %154 = vector.extract_strided_slice %152 {offsets = [0, 0], sizes = [2, 32], strides = [1, 1]} : vector<2x128xf32> to vector<2x32xf32>
    %155 = vector.extract_strided_slice %152 {offsets = [0, 32], sizes = [2, 32], strides = [1, 1]} : vector<2x128xf32> to vector<2x32xf32>
    %156 = vector.extract_strided_slice %153 {offsets = [0, 64], sizes = [2, 32], strides = [1, 1]} : vector<2x128xf32> to vector<2x32xf32>
    %157 = vector.extract_strided_slice %152 {offsets = [0, 96], sizes = [2, 32], strides = [1, 1]} : vector<2x128xf32> to vector<2x32xf32>
    %158 = arith.mulf %155, %141 : vector<2x32xf32>
    %159 = arith.mulf %154, %156 : vector<2x32xf32>
    %160 = arith.addf %158, %159 : vector<2x32xf32>
    %161 = math.tanh %160 : vector<2x32xf32>
    %162 = arith.mulf %157, %161 : vector<2x32xf32>
    %c0_39 = arith.constant 0 : index
    %c0_40 = arith.constant 0 : index
    %163 = vector.load %arg1[%c0_39, %c0_40] : memref<2x2xf32, #tpu.memory_space<vmem>>, vector<2x2xf32>
    %164 = vector.extract_strided_slice %163 {offsets = [0, 0], sizes = [2, 1], strides = [1, 1]} : vector<2x2xf32> to vector<2x1xf32>
    %165 = vector.extract_strided_slice %163 {offsets = [0, 1], sizes = [2, 1], strides = [1, 1]} : vector<2x2xf32> to vector<2x1xf32>
    %c0_41 = arith.constant 0 : index
    %c0_42 = arith.constant 0 : index
    %166 = vector.load %arg2[%c0_41, %c0_42] : memref<2x4xf32, #tpu.memory_space<vmem>>, vector<2x4xf32>
    %167 = vector.extract_strided_slice %166 {offsets = [0, 0], sizes = [2, 1], strides = [1, 1]} : vector<2x4xf32> to vector<2x1xf32>
    %168 = vector.broadcast %167 : vector<2x1xf32> to vector<2x128xf32>
    %169 = vector.broadcast %4 : vector<1x128xf32> to vector<2x128xf32>
    %170 = arith.mulf %168, %169 : vector<2x128xf32>
    %171 = vector.broadcast %5 : vector<1x128xf32> to vector<2x128xf32>
    %172 = arith.addf %170, %171 : vector<2x128xf32>
    %173 = vector.extract_strided_slice %166 {offsets = [0, 1], sizes = [2, 1], strides = [1, 1]} : vector<2x4xf32> to vector<2x1xf32>
    %174 = vector.broadcast %173 : vector<2x1xf32> to vector<2x128xf32>
    %175 = vector.broadcast %4 : vector<1x128xf32> to vector<2x128xf32>
    %176 = arith.mulf %174, %175 : vector<2x128xf32>
    %177 = vector.broadcast %5 : vector<1x128xf32> to vector<2x128xf32>
    %178 = arith.addf %176, %177 : vector<2x128xf32>
    %179 = vector.extract_strided_slice %166 {offsets = [0, 2], sizes = [2, 1], strides = [1, 1]} : vector<2x4xf32> to vector<2x1xf32>
    %180 = vector.broadcast %179 : vector<2x1xf32> to vector<2x128xf32>
    %181 = vector.broadcast %4 : vector<1x128xf32> to vector<2x128xf32>
    %182 = arith.mulf %180, %181 : vector<2x128xf32>
    %183 = vector.broadcast %5 : vector<1x128xf32> to vector<2x128xf32>
    %184 = arith.addf %182, %183 : vector<2x128xf32>
    %185 = vector.extract_strided_slice %166 {offsets = [0, 3], sizes = [2, 1], strides = [1, 1]} : vector<2x4xf32> to vector<2x1xf32>
    %186 = vector.broadcast %185 : vector<2x1xf32> to vector<2x128xf32>
    %187 = vector.broadcast %4 : vector<1x128xf32> to vector<2x128xf32>
    %188 = arith.mulf %186, %187 : vector<2x128xf32>
    %189 = vector.broadcast %5 : vector<1x128xf32> to vector<2x128xf32>
    %190 = arith.addf %188, %189 : vector<2x128xf32>
    %191 = vector.broadcast %164 : vector<2x1xf32> to vector<2x128xf32>
    %192 = vector.broadcast %2 : vector<1x128xf32> to vector<2x128xf32>
    %193 = arith.mulf %191, %192 : vector<2x128xf32>
    %194 = vector.broadcast %165 : vector<2x1xf32> to vector<2x128xf32>
    %195 = vector.broadcast %3 : vector<1x128xf32> to vector<2x128xf32>
    %196 = arith.mulf %194, %195 : vector<2x128xf32>
    %197 = arith.addf %193, %196 : vector<2x128xf32>
    %198 = arith.addf %197, %172 : vector<2x128xf32>
    %cst_43 = arith.constant dense<0.000000e+00> : vector<2x128xf32>
    %199 = tpu.matmul %162, %0, %cst_43 {dimension_numbers = #tpu.dot_dimension_numbers<[1], [0], [0], [1], [0, 0, 1, 1], [], []>} : vector<2x32xf32>, vector<32x128xf32>, vector<2x128xf32> -> vector<2x128xf32>
    %200 = arith.addf %198, %199 : vector<2x128xf32>
    %201 = arith.negf %200 : vector<2x128xf32>
    %202 = math.exp %201 : vector<2x128xf32>
    %cst_44 = arith.constant 1.000000e+00 : f32
    %203 = vector.broadcast %cst_44 : f32 to vector<2x128xf32>
    %204 = arith.addf %203, %202 : vector<2x128xf32>
    %205 = arith.divf %203, %204 : vector<2x128xf32>
    %206 = math.tanh %200 : vector<2x128xf32>
    %207 = vector.extract_strided_slice %205 {offsets = [0, 0], sizes = [2, 32], strides = [1, 1]} : vector<2x128xf32> to vector<2x32xf32>
    %208 = vector.extract_strided_slice %205 {offsets = [0, 32], sizes = [2, 32], strides = [1, 1]} : vector<2x128xf32> to vector<2x32xf32>
    %209 = vector.extract_strided_slice %206 {offsets = [0, 64], sizes = [2, 32], strides = [1, 1]} : vector<2x128xf32> to vector<2x32xf32>
    %210 = vector.extract_strided_slice %205 {offsets = [0, 96], sizes = [2, 32], strides = [1, 1]} : vector<2x128xf32> to vector<2x32xf32>
    %211 = arith.mulf %208, %160 : vector<2x32xf32>
    %212 = arith.mulf %207, %209 : vector<2x32xf32>
    %213 = arith.addf %211, %212 : vector<2x32xf32>
    %214 = math.tanh %213 : vector<2x32xf32>
    %215 = arith.mulf %210, %214 : vector<2x32xf32>
    %cst_45 = arith.constant dense<0.000000e+00> : vector<2x4xf32>
    %216 = tpu.matmul %215, %7, %cst_45 {dimension_numbers = #tpu.dot_dimension_numbers<[1], [0], [0], [1], [0, 0, 1, 1], [], []>} : vector<2x32xf32>, vector<32x4xf32>, vector<2x4xf32> -> vector<2x4xf32>
    %217 = vector.broadcast %8 : vector<1x4xf32> to vector<2x4xf32>
    %218 = arith.addf %216, %217 : vector<2x4xf32>
    %219 = vector.extract_strided_slice %218 {offsets = [0, 0], sizes = [2, 1], strides = [1, 1]} : vector<2x4xf32> to vector<2x1xf32>
    %220 = vector.extract_strided_slice %218 {offsets = [0, 2], sizes = [2, 1], strides = [1, 1]} : vector<2x4xf32> to vector<2x1xf32>
    %221 = arith.mulf %219, %220 : vector<2x1xf32>
    %222 = vector.extract_strided_slice %218 {offsets = [0, 1], sizes = [2, 1], strides = [1, 1]} : vector<2x4xf32> to vector<2x1xf32>
    %223 = vector.extract_strided_slice %218 {offsets = [0, 3], sizes = [2, 1], strides = [1, 1]} : vector<2x4xf32> to vector<2x1xf32>
    %224 = arith.mulf %222, %223 : vector<2x1xf32>
    %225 = arith.addf %164, %221 : vector<2x1xf32>
    %226 = arith.addf %165, %224 : vector<2x1xf32>
    %cst_46 = arith.constant 1.000000e+00 : f32
    %227 = vector.broadcast %cst_46 : f32 to vector<2x1xf32>
    %228 = arith.cmpf ogt, %226, %227 : vector<2x1xf32>
    %cst_47 = arith.constant 0.000000e+00 : f32
    %229 = vector.broadcast %cst_47 : f32 to vector<2x1xf32>
    %230 = arith.cmpf olt, %226, %229 : vector<2x1xf32>
    %cst_48 = arith.constant 1.000000e+00 : f32
    %231 = vector.broadcast %cst_48 : f32 to vector<2x1xf32>
    %232 = arith.subf %226, %231 : vector<2x1xf32>
    %cst_49 = arith.constant 1.000000e+00 : f32
    %233 = vector.broadcast %cst_49 : f32 to vector<2x1xf32>
    %234 = arith.subf %233, %232 : vector<2x1xf32>
    %cst_50 = arith.constant 0.000000e+00 : f32
    %235 = vector.broadcast %cst_50 : f32 to vector<2x1xf32>
    %236 = arith.subf %235, %226 : vector<2x1xf32>
    %237 = arith.select %230, %236, %226 : vector<2x1xi1>, vector<2x1xf32>
    %238 = arith.select %228, %234, %237 : vector<2x1xi1>, vector<2x1xf32>
    %239 = arith.ori %228, %230 : vector<2x1xi1>
    %cst_51 = arith.constant 5.000000e-01 : f32
    %240 = vector.broadcast %cst_51 : f32 to vector<2x1xf32>
    %241 = arith.subf %225, %240 : vector<2x1xf32>
    %242 = arith.select %239, %241, %225 : vector<2x1xi1>, vector<2x1xf32>
    %cst_52 = arith.constant 0.000000e+00 : f32
    %243 = vector.broadcast %cst_52 : f32 to vector<2x1xf32>
    %244 = arith.cmpf oge, %242, %243 : vector<2x1xf32>
    %245 = math.floor %242 : vector<2x1xf32>
    %246 = math.ceil %242 : vector<2x1xf32>
    %247 = arith.select %244, %245, %246 : vector<2x1xi1>, vector<2x1xf32>
    %248 = arith.subf %242, %247 : vector<2x1xf32>
    %249 = vector.broadcast %248 : vector<2x1xf32> to vector<2x128xf32>
    %250 = vector.broadcast %2 : vector<1x128xf32> to vector<2x128xf32>
    %251 = arith.mulf %249, %250 : vector<2x128xf32>
    %252 = vector.broadcast %238 : vector<2x1xf32> to vector<2x128xf32>
    %253 = vector.broadcast %3 : vector<1x128xf32> to vector<2x128xf32>
    %254 = arith.mulf %252, %253 : vector<2x128xf32>
    %255 = arith.addf %251, %254 : vector<2x128xf32>
    %256 = arith.addf %255, %178 : vector<2x128xf32>
    %cst_53 = arith.constant dense<0.000000e+00> : vector<2x128xf32>
    %257 = tpu.matmul %215, %0, %cst_53 {dimension_numbers = #tpu.dot_dimension_numbers<[1], [0], [0], [1], [0, 0, 1, 1], [], []>} : vector<2x32xf32>, vector<32x128xf32>, vector<2x128xf32> -> vector<2x128xf32>
    %258 = arith.addf %256, %257 : vector<2x128xf32>
    %259 = arith.negf %258 : vector<2x128xf32>
    %260 = math.exp %259 : vector<2x128xf32>
    %cst_54 = arith.constant 1.000000e+00 : f32
    %261 = vector.broadcast %cst_54 : f32 to vector<2x128xf32>
    %262 = arith.addf %261, %260 : vector<2x128xf32>
    %263 = arith.divf %261, %262 : vector<2x128xf32>
    %264 = math.tanh %258 : vector<2x128xf32>
    %265 = vector.extract_strided_slice %263 {offsets = [0, 0], sizes = [2, 32], strides = [1, 1]} : vector<2x128xf32> to vector<2x32xf32>
    %266 = vector.extract_strided_slice %263 {offsets = [0, 32], sizes = [2, 32], strides = [1, 1]} : vector<2x128xf32> to vector<2x32xf32>
    %267 = vector.extract_strided_slice %264 {offsets = [0, 64], sizes = [2, 32], strides = [1, 1]} : vector<2x128xf32> to vector<2x32xf32>
    %268 = vector.extract_strided_slice %263 {offsets = [0, 96], sizes = [2, 32], strides = [1, 1]} : vector<2x128xf32> to vector<2x32xf32>
    %269 = arith.mulf %266, %213 : vector<2x32xf32>
    %270 = arith.mulf %265, %267 : vector<2x32xf32>
    %271 = arith.addf %269, %270 : vector<2x32xf32>
    %272 = math.tanh %271 : vector<2x32xf32>
    %273 = arith.mulf %268, %272 : vector<2x32xf32>
    %cst_55 = arith.constant dense<0.000000e+00> : vector<2x4xf32>
    %274 = tpu.matmul %273, %7, %cst_55 {dimension_numbers = #tpu.dot_dimension_numbers<[1], [0], [0], [1], [0, 0, 1, 1], [], []>} : vector<2x32xf32>, vector<32x4xf32>, vector<2x4xf32> -> vector<2x4xf32>
    %275 = vector.broadcast %8 : vector<1x4xf32> to vector<2x4xf32>
    %276 = arith.addf %274, %275 : vector<2x4xf32>
    %277 = vector.extract_strided_slice %276 {offsets = [0, 0], sizes = [2, 1], strides = [1, 1]} : vector<2x4xf32> to vector<2x1xf32>
    %278 = vector.extract_strided_slice %276 {offsets = [0, 2], sizes = [2, 1], strides = [1, 1]} : vector<2x4xf32> to vector<2x1xf32>
    %279 = arith.mulf %277, %278 : vector<2x1xf32>
    %280 = vector.extract_strided_slice %276 {offsets = [0, 1], sizes = [2, 1], strides = [1, 1]} : vector<2x4xf32> to vector<2x1xf32>
    %281 = vector.extract_strided_slice %276 {offsets = [0, 3], sizes = [2, 1], strides = [1, 1]} : vector<2x4xf32> to vector<2x1xf32>
    %282 = arith.mulf %280, %281 : vector<2x1xf32>
    %283 = arith.addf %248, %279 : vector<2x1xf32>
    %284 = arith.addf %238, %282 : vector<2x1xf32>
    %cst_56 = arith.constant 1.000000e+00 : f32
    %285 = vector.broadcast %cst_56 : f32 to vector<2x1xf32>
    %286 = arith.cmpf ogt, %284, %285 : vector<2x1xf32>
    %cst_57 = arith.constant 0.000000e+00 : f32
    %287 = vector.broadcast %cst_57 : f32 to vector<2x1xf32>
    %288 = arith.cmpf olt, %284, %287 : vector<2x1xf32>
    %cst_58 = arith.constant 1.000000e+00 : f32
    %289 = vector.broadcast %cst_58 : f32 to vector<2x1xf32>
    %290 = arith.subf %284, %289 : vector<2x1xf32>
    %cst_59 = arith.constant 1.000000e+00 : f32
    %291 = vector.broadcast %cst_59 : f32 to vector<2x1xf32>
    %292 = arith.subf %291, %290 : vector<2x1xf32>
    %cst_60 = arith.constant 0.000000e+00 : f32
    %293 = vector.broadcast %cst_60 : f32 to vector<2x1xf32>
    %294 = arith.subf %293, %284 : vector<2x1xf32>
    %295 = arith.select %288, %294, %284 : vector<2x1xi1>, vector<2x1xf32>
    %296 = arith.select %286, %292, %295 : vector<2x1xi1>, vector<2x1xf32>
    %297 = arith.ori %286, %288 : vector<2x1xi1>
    %cst_61 = arith.constant 5.000000e-01 : f32
    %298 = vector.broadcast %cst_61 : f32 to vector<2x1xf32>
    %299 = arith.subf %283, %298 : vector<2x1xf32>
    %300 = arith.select %297, %299, %283 : vector<2x1xi1>, vector<2x1xf32>
    %cst_62 = arith.constant 0.000000e+00 : f32
    %301 = vector.broadcast %cst_62 : f32 to vector<2x1xf32>
    %302 = arith.cmpf oge, %300, %301 : vector<2x1xf32>
    %303 = math.floor %300 : vector<2x1xf32>
    %304 = math.ceil %300 : vector<2x1xf32>
    %305 = arith.select %302, %303, %304 : vector<2x1xi1>, vector<2x1xf32>
    %306 = arith.subf %300, %305 : vector<2x1xf32>
    %307 = vector.broadcast %306 : vector<2x1xf32> to vector<2x128xf32>
    %308 = vector.broadcast %2 : vector<1x128xf32> to vector<2x128xf32>
    %309 = arith.mulf %307, %308 : vector<2x128xf32>
    %310 = vector.broadcast %296 : vector<2x1xf32> to vector<2x128xf32>
    %311 = vector.broadcast %3 : vector<1x128xf32> to vector<2x128xf32>
    %312 = arith.mulf %310, %311 : vector<2x128xf32>
    %313 = arith.addf %309, %312 : vector<2x128xf32>
    %314 = arith.addf %313, %184 : vector<2x128xf32>
    %cst_63 = arith.constant dense<0.000000e+00> : vector<2x128xf32>
    %315 = tpu.matmul %273, %0, %cst_63 {dimension_numbers = #tpu.dot_dimension_numbers<[1], [0], [0], [1], [0, 0, 1, 1], [], []>} : vector<2x32xf32>, vector<32x128xf32>, vector<2x128xf32> -> vector<2x128xf32>
    %316 = arith.addf %314, %315 : vector<2x128xf32>
    %317 = arith.negf %316 : vector<2x128xf32>
    %318 = math.exp %317 : vector<2x128xf32>
    %cst_64 = arith.constant 1.000000e+00 : f32
    %319 = vector.broadcast %cst_64 : f32 to vector<2x128xf32>
    %320 = arith.addf %319, %318 : vector<2x128xf32>
    %321 = arith.divf %319, %320 : vector<2x128xf32>
    %322 = math.tanh %316 : vector<2x128xf32>
    %323 = vector.extract_strided_slice %321 {offsets = [0, 0], sizes = [2, 32], strides = [1, 1]} : vector<2x128xf32> to vector<2x32xf32>
    %324 = vector.extract_strided_slice %321 {offsets = [0, 32], sizes = [2, 32], strides = [1, 1]} : vector<2x128xf32> to vector<2x32xf32>
    %325 = vector.extract_strided_slice %322 {offsets = [0, 64], sizes = [2, 32], strides = [1, 1]} : vector<2x128xf32> to vector<2x32xf32>
    %326 = vector.extract_strided_slice %321 {offsets = [0, 96], sizes = [2, 32], strides = [1, 1]} : vector<2x128xf32> to vector<2x32xf32>
    %327 = arith.mulf %324, %271 : vector<2x32xf32>
    %328 = arith.mulf %323, %325 : vector<2x32xf32>
    %329 = arith.addf %327, %328 : vector<2x32xf32>
    %330 = math.tanh %329 : vector<2x32xf32>
    %331 = arith.mulf %326, %330 : vector<2x32xf32>
    %cst_65 = arith.constant dense<0.000000e+00> : vector<2x4xf32>
    %332 = tpu.matmul %331, %7, %cst_65 {dimension_numbers = #tpu.dot_dimension_numbers<[1], [0], [0], [1], [0, 0, 1, 1], [], []>} : vector<2x32xf32>, vector<32x4xf32>, vector<2x4xf32> -> vector<2x4xf32>
    %333 = vector.broadcast %8 : vector<1x4xf32> to vector<2x4xf32>
    %334 = arith.addf %332, %333 : vector<2x4xf32>
    %335 = vector.extract_strided_slice %334 {offsets = [0, 0], sizes = [2, 1], strides = [1, 1]} : vector<2x4xf32> to vector<2x1xf32>
    %336 = vector.extract_strided_slice %334 {offsets = [0, 2], sizes = [2, 1], strides = [1, 1]} : vector<2x4xf32> to vector<2x1xf32>
    %337 = arith.mulf %335, %336 : vector<2x1xf32>
    %338 = vector.extract_strided_slice %334 {offsets = [0, 1], sizes = [2, 1], strides = [1, 1]} : vector<2x4xf32> to vector<2x1xf32>
    %339 = vector.extract_strided_slice %334 {offsets = [0, 3], sizes = [2, 1], strides = [1, 1]} : vector<2x4xf32> to vector<2x1xf32>
    %340 = arith.mulf %338, %339 : vector<2x1xf32>
    %341 = arith.addf %306, %337 : vector<2x1xf32>
    %342 = arith.addf %296, %340 : vector<2x1xf32>
    %cst_66 = arith.constant 1.000000e+00 : f32
    %343 = vector.broadcast %cst_66 : f32 to vector<2x1xf32>
    %344 = arith.cmpf ogt, %342, %343 : vector<2x1xf32>
    %cst_67 = arith.constant 0.000000e+00 : f32
    %345 = vector.broadcast %cst_67 : f32 to vector<2x1xf32>
    %346 = arith.cmpf olt, %342, %345 : vector<2x1xf32>
    %cst_68 = arith.constant 1.000000e+00 : f32
    %347 = vector.broadcast %cst_68 : f32 to vector<2x1xf32>
    %348 = arith.subf %342, %347 : vector<2x1xf32>
    %cst_69 = arith.constant 1.000000e+00 : f32
    %349 = vector.broadcast %cst_69 : f32 to vector<2x1xf32>
    %350 = arith.subf %349, %348 : vector<2x1xf32>
    %cst_70 = arith.constant 0.000000e+00 : f32
    %351 = vector.broadcast %cst_70 : f32 to vector<2x1xf32>
    %352 = arith.subf %351, %342 : vector<2x1xf32>
    %353 = arith.select %346, %352, %342 : vector<2x1xi1>, vector<2x1xf32>
    %354 = arith.select %344, %350, %353 : vector<2x1xi1>, vector<2x1xf32>
    %355 = arith.ori %344, %346 : vector<2x1xi1>
    %cst_71 = arith.constant 5.000000e-01 : f32
    %356 = vector.broadcast %cst_71 : f32 to vector<2x1xf32>
    %357 = arith.subf %341, %356 : vector<2x1xf32>
    %358 = arith.select %355, %357, %341 : vector<2x1xi1>, vector<2x1xf32>
    %cst_72 = arith.constant 0.000000e+00 : f32
    %359 = vector.broadcast %cst_72 : f32 to vector<2x1xf32>
    %360 = arith.cmpf oge, %358, %359 : vector<2x1xf32>
    %361 = math.floor %358 : vector<2x1xf32>
    %362 = math.ceil %358 : vector<2x1xf32>
    %363 = arith.select %360, %361, %362 : vector<2x1xi1>, vector<2x1xf32>
    %364 = arith.subf %358, %363 : vector<2x1xf32>
    %365 = vector.broadcast %364 : vector<2x1xf32> to vector<2x128xf32>
    %366 = vector.broadcast %2 : vector<1x128xf32> to vector<2x128xf32>
    %367 = arith.mulf %365, %366 : vector<2x128xf32>
    %368 = vector.broadcast %354 : vector<2x1xf32> to vector<2x128xf32>
    %369 = vector.broadcast %3 : vector<1x128xf32> to vector<2x128xf32>
    %370 = arith.mulf %368, %369 : vector<2x128xf32>
    %371 = arith.addf %367, %370 : vector<2x128xf32>
    %372 = arith.addf %371, %190 : vector<2x128xf32>
    %cst_73 = arith.constant dense<0.000000e+00> : vector<2x128xf32>
    %373 = tpu.matmul %331, %0, %cst_73 {dimension_numbers = #tpu.dot_dimension_numbers<[1], [0], [0], [1], [0, 0, 1, 1], [], []>} : vector<2x32xf32>, vector<32x128xf32>, vector<2x128xf32> -> vector<2x128xf32>
    %374 = arith.addf %372, %373 : vector<2x128xf32>
    %375 = arith.negf %374 : vector<2x128xf32>
    %376 = math.exp %375 : vector<2x128xf32>
    %cst_74 = arith.constant 1.000000e+00 : f32
    %377 = vector.broadcast %cst_74 : f32 to vector<2x128xf32>
    %378 = arith.addf %377, %376 : vector<2x128xf32>
    %379 = arith.divf %377, %378 : vector<2x128xf32>
    %380 = math.tanh %374 : vector<2x128xf32>
    %381 = vector.extract_strided_slice %379 {offsets = [0, 0], sizes = [2, 32], strides = [1, 1]} : vector<2x128xf32> to vector<2x32xf32>
    %382 = vector.extract_strided_slice %379 {offsets = [0, 32], sizes = [2, 32], strides = [1, 1]} : vector<2x128xf32> to vector<2x32xf32>
    %383 = vector.extract_strided_slice %380 {offsets = [0, 64], sizes = [2, 32], strides = [1, 1]} : vector<2x128xf32> to vector<2x32xf32>
    %384 = vector.extract_strided_slice %379 {offsets = [0, 96], sizes = [2, 32], strides = [1, 1]} : vector<2x128xf32> to vector<2x32xf32>
    %385 = arith.mulf %382, %329 : vector<2x32xf32>
    %386 = arith.mulf %381, %383 : vector<2x32xf32>
    %387 = arith.addf %385, %386 : vector<2x32xf32>
    %388 = math.tanh %387 : vector<2x32xf32>
    %389 = arith.mulf %384, %388 : vector<2x32xf32>
    %cst_75 = arith.constant dense<0.000000e+00> : vector<2x4xf32>
    %390 = tpu.matmul %389, %7, %cst_75 {dimension_numbers = #tpu.dot_dimension_numbers<[1], [0], [0], [1], [0, 0, 1, 1], [], []>} : vector<2x32xf32>, vector<32x4xf32>, vector<2x4xf32> -> vector<2x4xf32>
    %391 = vector.broadcast %8 : vector<1x4xf32> to vector<2x4xf32>
    %392 = arith.addf %390, %391 : vector<2x4xf32>
    %393 = vector.extract_strided_slice %392 {offsets = [0, 0], sizes = [2, 1], strides = [1, 1]} : vector<2x4xf32> to vector<2x1xf32>
    %394 = vector.extract_strided_slice %392 {offsets = [0, 2], sizes = [2, 1], strides = [1, 1]} : vector<2x4xf32> to vector<2x1xf32>
    %395 = arith.mulf %393, %394 : vector<2x1xf32>
    %396 = vector.extract_strided_slice %392 {offsets = [0, 1], sizes = [2, 1], strides = [1, 1]} : vector<2x4xf32> to vector<2x1xf32>
    %397 = vector.extract_strided_slice %392 {offsets = [0, 3], sizes = [2, 1], strides = [1, 1]} : vector<2x4xf32> to vector<2x1xf32>
    %398 = arith.mulf %396, %397 : vector<2x1xf32>
    %399 = arith.addf %364, %395 : vector<2x1xf32>
    %400 = arith.addf %354, %398 : vector<2x1xf32>
    %cst_76 = arith.constant 1.000000e+00 : f32
    %401 = vector.broadcast %cst_76 : f32 to vector<2x1xf32>
    %402 = arith.cmpf ogt, %400, %401 : vector<2x1xf32>
    %cst_77 = arith.constant 0.000000e+00 : f32
    %403 = vector.broadcast %cst_77 : f32 to vector<2x1xf32>
    %404 = arith.cmpf olt, %400, %403 : vector<2x1xf32>
    %cst_78 = arith.constant 1.000000e+00 : f32
    %405 = vector.broadcast %cst_78 : f32 to vector<2x1xf32>
    %406 = arith.subf %400, %405 : vector<2x1xf32>
    %cst_79 = arith.constant 1.000000e+00 : f32
    %407 = vector.broadcast %cst_79 : f32 to vector<2x1xf32>
    %408 = arith.subf %407, %406 : vector<2x1xf32>
    %cst_80 = arith.constant 0.000000e+00 : f32
    %409 = vector.broadcast %cst_80 : f32 to vector<2x1xf32>
    %410 = arith.subf %409, %400 : vector<2x1xf32>
    %411 = arith.select %404, %410, %400 : vector<2x1xi1>, vector<2x1xf32>
    %412 = arith.select %402, %408, %411 : vector<2x1xi1>, vector<2x1xf32>
    %413 = arith.ori %402, %404 : vector<2x1xi1>
    %cst_81 = arith.constant 5.000000e-01 : f32
    %414 = vector.broadcast %cst_81 : f32 to vector<2x1xf32>
    %415 = arith.subf %399, %414 : vector<2x1xf32>
    %416 = arith.select %413, %415, %399 : vector<2x1xi1>, vector<2x1xf32>
    %cst_82 = arith.constant 0.000000e+00 : f32
    %417 = vector.broadcast %cst_82 : f32 to vector<2x1xf32>
    %418 = arith.cmpf oge, %416, %417 : vector<2x1xf32>
    %419 = math.floor %416 : vector<2x1xf32>
    %420 = math.ceil %416 : vector<2x1xf32>
    %421 = arith.select %418, %419, %420 : vector<2x1xi1>, vector<2x1xf32>
    %422 = arith.subf %416, %421 : vector<2x1xf32>
    %423 = tpu.concatenate %248, %238, %306, %296, %364, %354, %422, %412 in 1 : vector<2x1xf32>, vector<2x1xf32>, vector<2x1xf32>, vector<2x1xf32>, vector<2x1xf32>, vector<2x1xf32>, vector<2x1xf32>, vector<2x1xf32> -> vector<2x8xf32>
    %c0_83 = arith.constant 0 : index
    %c0_84 = arith.constant 0 : index
    %424 = vector.load %arg6[%c0_83, %c0_84] : memref<2x8xf32, #tpu.memory_space<vmem>>, vector<2x8xf32>
    tpu.vector_store %arg6[%c0_83, %c0_84], %423 {strides = array<i32>} : memref<2x8xf32, #tpu.memory_space<vmem>>, vector<2x8xf32>,
    return
  }
}

</mosaic_0001>

<llo_original>
// kernel: track_pos_forward.1
$region0: #{track_pos_forward.1}
  #allocation0 [shape = 'u32[]', space=smem, size = 0x4, offset = 0x4, fixed_abs, tag = 'smem constant byte address 0x4 - core index']
  #allocation1 [shape = 'u32[72,128]{1,0:T(1,128)}', space=vmem, size = 0x9000, scoped, tag = 'internal scratch']
  %s0 = inlined_call_operand.vmem [shape: f32[8,2,128], index: 0, kind: input, shape index: {}]
  %s1 = inlined_call_operand.vmem [shape: f32[2,2], index: 1, kind: input, shape index: {}]
  %s2 = inlined_call_operand.vmem [shape: f32[2,4], index: 2, kind: input, shape index: {}]
  %s3 = inlined_call_operand.vmem [shape: f32[4,128], index: 3, kind: input, shape index: {}]
  %s4 = inlined_call_operand.vmem [shape: f32[32,128], index: 4, kind: input, shape index: {}]
  %s5 = inlined_call_operand.vmem [shape: f32[33,4], index: 5, kind: input, shape index: {}]
  %s6 = inlined_call_operand.vmem [shape: f32[2,8], index: 6, kind: output, shape index: {}]
  %s7 = sld [smem:[#allocation0]]
  $region34: #{track_pos_forward.1} parent=0
    _
  %s9 = ssub.s32 1, %s7
  %s10 = scalar_select 0, %s9, %s7
  // Predicated region
  $region2: #{track_pos_forward.1} parent=0 // pred_check
    _
  $region3: #{track_pos_forward.1} parent=0 // pred_check_branch
    %12 = sbr.rel (0) target = $region5
  $region4: #{track_pos_forward.1} parent=0 // pred_region
    _
  $region5: #{track_pos_forward.1} parent=0 // pred_fallthru
    _
  // Predicated region
  $region6: #{track_pos_forward.1} parent=0 // pred_check
    _
  $region7: #{track_pos_forward.1} parent=0 // pred_check_branch
    %14 = sbr.rel (0) target = $region9
  $region8: #{track_pos_forward.1} parent=0 // pred_region
    _
  $region9: #{track_pos_forward.1} parent=0 // pred_fallthru
    _
  // Predicated region
  $region10: #{track_pos_forward.1} parent=0 // pred_check
    _
  $region11: #{track_pos_forward.1} parent=0 // pred_check_branch
    %16 = sbr.rel (0) target = $region13
  $region12: #{track_pos_forward.1} parent=0 // pred_region
    _
  $region13: #{track_pos_forward.1} parent=0 // pred_fallthru
    _
  // Predicated region
  $region14: #{track_pos_forward.1} parent=0 // pred_check
    _
  $region15: #{track_pos_forward.1} parent=0 // pred_check_branch
    %18 = sbr.rel (0) target = $region17
  $region16: #{track_pos_forward.1} parent=0 // pred_region
    _
  $region17: #{track_pos_forward.1} parent=0 // pred_fallthru
    _
  // Predicated region
  $region18: #{track_pos_forward.1} parent=0 // pred_check
    _
  $region19: #{track_pos_forward.1} parent=0 // pred_check_branch
    %20 = sbr.rel (0) target = $region21
  $region20: #{track_pos_forward.1} parent=0 // pred_region
    _
  $region21: #{track_pos_forward.1} parent=0 // pred_fallthru
    _
  // Predicated region
  $region22: #{track_pos_forward.1} parent=0 // pred_check
    _
  $region23: #{track_pos_forward.1} parent=0 // pred_check_branch
    %22 = sbr.rel (0) target = $region25
  $region24: #{track_pos_forward.1} parent=0 // pred_region
    _
  $region25: #{track_pos_forward.1} parent=0 // pred_fallthru
    _
  %v23 = vld [vmem:[%s4] sm:$0xff]
  %v24 = vld [vmem:[%s4 + $0x8] sm:$0xff]
  %v25 = vld [vmem:[%s4 + $0x10] sm:$0xff]
  %v26 = vld [vmem:[%s4 + $0x18] sm:$0xff]
  %v27 = vld [vmem:[%s3] sm:$0xf]
  %v28 = vld [vmem:[%s5] sm:$0xff]
  %v29 = vld [vmem:[%s5 + $0x8] sm:$0xff]
  %v30 = vld [vmem:[%s5 + $0x10] sm:$0xff]
  %v31 = vld [vmem:[%s5 + $0x18] sm:$0xff]
  %v32 = vld [vmem:[%s5 + $0x20] sm:$0x1]
  %v33 = vld [vmem:[%s0] sm:$0x3]
  %vm34 = vcmask 261120
  %v36 = vsel %vm34, 0.0, 0
  %38 = vmatpush.msra.mxu0 0.0
  %39 = vmatpush.msra.mxu0 0.0
  %40 = vmatpush.msra.mxu0 0.0
  %41 = vmatpush.msra.mxu0 0.0
  %42 = vmatpush.msra.mxu0 0.0
  %43 = vmatpush.msra.mxu0 0.0
  %44 = vmatpush.msra.mxu0 0.0
  %45 = vmatpush.msra.mxu0 0.0
  %46 = vmatpush.msra.mxu0 0.0
  %47 = vmatpush.msra.mxu0 0.0
  %48 = vmatpush.msra.mxu0 0.0
  %49 = vmatpush.msra.mxu0 0.0
  %50 = vmatpush.msra.mxu0 %v26
  %51 = vmatpush.msra.mxu0 %v25
  %52 = vmatpush.msra.mxu0 %v24
  %53 = vmatpush.msra.mxu0 %v23
  %54 = vmatmul.f32.gmra.mxu0 %v36
  %v55 = vpop.f32.mrf.mxu0
  %v56 = vadd.f32 0.0, %v55
  %57 = vdwg.mxu0
  %v58 = vadd.f32 %v33, %v56
  %v59 = vxor.u32 %v58, 2147483648
  %v60 = vmul.f32 %v59, 1.442695
  %v61 = vpow.pop %v60
  %v62 = vadd.f32 %v61, 1.0
  %v63 = vrcp.pop %v62
  %v64 = vmul.f32 %v62, %v63
  %v65 = vsub.f32 1.0, %v64
  %v66 = vmul.f32 %v63, %v65
  %v67 = vadd.f32 %v63, %v66
  %vm68 = vweird.f32 %v62
  %vm69 = vweird.f32 %v63
  %vm70 = vmor %vm68, %vm69
  %v71 = vsel %vm70, %v63, %v67
  %v72 = vand.u32 2147483647, %v62
  %vm73 = vcmp.eq.f32.partialorder %v72, 8.507059e+37
  %v74 = vand.u32 %v62, 2147483648
  %v75 = vor.u32 1.1754944e-38, %v74
  %v76 = vsel %vm73, %v75, %v71
  %v77 = vmul.f32 1.0, %v76
  %v78 = vtanh.pop %v58
  %v79 = vmul.f32 %v77, 0.0
  %81 = vrot.lane.b32.xlu0 %v78, 64
  %v82 = vpop.permute.xlu0 %81
  %v84 = vmul.f32 %v77, %v82
  %86 = vrot.lane.b32.xlu0 %v84, 32
  %v87 = vpop.permute.xlu0 %86
  %v89 = vadd.f32 %v79, %v87
  %v90 = vtanh.pop %v89
  %92 = vrot.lane.b32.xlu0 %v90, 64
  %v93 = vpop.permute.xlu0 %92
  %v95 = vmul.f32 %v77, %v93
  %s96 = scalar_lea.vmem %s0, 2
  %v97 = vld [vmem:[%s96] sm:$0x3]
  %99 = vrot.lane.b32.xlu0 %v95, 32
  %v100 = vpop.permute.xlu0 %99
  %v101 = vsel %vm34, %v100, 0
  %103 = vmatpush.msra.mxu0 0.0
  %104 = vmatpush.msra.mxu0 0.0
  %105 = vmatpush.msra.mxu0 0.0
  %106 = vmatpush.msra.mxu0 0.0
  %107 = vmatpush.msra.mxu0 0.0
  %108 = vmatpush.msra.mxu0 0.0
  %109 = vmatpush.msra.mxu0 0.0
  %110 = vmatpush.msra.mxu0 0.0
  %111 = vmatpush.msra.mxu0 0.0
  %112 = vmatpush.msra.mxu0 0.0
  %113 = vmatpush.msra.mxu0 0.0
  %114 = vmatpush.msra.mxu0 0.0
  %115 = vmatpush.msra.mxu0 %v26
  %116 = vmatpush.msra.mxu0 %v25
  %117 = vmatpush.msra.mxu0 %v24
  %118 = vmatpush.msra.mxu0 %v23
  %119 = vmatmul.f32.gmra.mxu0 %v101
  %v120 = vpop.f32.mrf.mxu0
  %v121 = vadd.f32 0.0, %v120
  %122 = vdwg.mxu0
  %v123 = vadd.f32 %v97, %v121
  %v124 = vxor.u32 %v123, 2147483648
  %v125 = vmul.f32 %v124, 1.442695
  %v126 = vpow.pop %v125
  %v127 = vadd.f32 %v126, 1.0
  %v128 = vrcp.pop %v127
  %v129 = vmul.f32 %v127, %v128
  %v130 = vsub.f32 1.0, %v129
  %v131 = vmul.f32 %v128, %v130
  %v132 = vadd.f32 %v128, %v131
  %vm133 = vweird.f32 %v127
  %vm134 = vweird.f32 %v128
  %vm135 = vmor %vm133, %vm134
  %v136 = vsel %vm135, %v128, %v132
  %v137 = vand.u32 2147483647, %v127
  %vm138 = vcmp.eq.f32.partialorder %v137, 8.507059e+37
  %v139 = vand.u32 %v127, 2147483648
  %v140 = vor.u32 1.1754944e-38, %v139
  %v141 = vsel %vm138, %v140, %v136
  %v142 = vmul.f32 1.0, %v141
  %v143 = vtanh.pop %v123
  %v144 = vmul.f32 %v142, %v89
  %146 = vrot.lane.b32.xlu0 %v143, 64
  %v147 = vpop.permute.xlu0 %146
  %v149 = vmul.f32 %v142, %v147
  %151 = vrot.lane.b32.xlu0 %v149, 32
  %v152 = vpop.permute.xlu0 %151
  %v154 = vadd.f32 %v144, %v152
  %v155 = vtanh.pop %v154
  %157 = vrot.lane.b32.xlu0 %v155, 64
  %v158 = vpop.permute.xlu0 %157
  %v160 = vmul.f32 %v142, %v158
  %s161 = scalar_lea.vmem %s0, 4
  %v162 = vld [vmem:[%s161] sm:$0x3]
  %164 = vrot.lane.b32.xlu0 %v160, 32
  %v165 = vpop.permute.xlu0 %164
  %v166 = vsel %vm34, %v165, 0
  %168 = vmatpush.msra.mxu0 0.0
  %169 = vmatpush.msra.mxu0 0.0
  %170 = vmatpush.msra.mxu0 0.0
  %171 = vmatpush.msra.mxu0 0.0
  %172 = vmatpush.msra.mxu0 0.0
  %173 = vmatpush.msra.mxu0 0.0
  %174 = vmatpush.msra.mxu0 0.0
  %175 = vmatpush.msra.mxu0 0.0
  %176 = vmatpush.msra.mxu0 0.0
  %177 = vmatpush.msra.mxu0 0.0
  %178 = vmatpush.msra.mxu0 0.0
  %179 = vmatpush.msra.mxu0 0.0
  %180 = vmatpush.msra.mxu0 %v26
  %181 = vmatpush.msra.mxu0 %v25
  %182 = vmatpush.msra.mxu0 %v24
  %183 = vmatpush.msra.mxu0 %v23
  %184 = vmatmul.f32.gmra.mxu0 %v166
  %v185 = vpop.f32.mrf.mxu0
  %v186 = vadd.f32 0.0, %v185
  %187 = vdwg.mxu0
  %v188 = vadd.f32 %v162, %v186
  %v189 = vxor.u32 %v188, 2147483648
  %v190 = vmul.f32 %v189, 1.442695
  %v191 = vpow.pop %v190
  %v192 = vadd.f32 %v191, 1.0
  %v193 = vrcp.pop %v192
  %v194 = vmul.f32 %v192, %v193
  %v195 = vsub.f32 1.0, %v194
  %v196 = vmul.f32 %v193, %v195
  %v197 = vadd.f32 %v193, %v196
  %vm198 = vweird.f32 %v192
  %vm199 = vweird.f32 %v193
  %vm200 = vmor %vm198, %vm199
  %v201 = vsel %vm200, %v193, %v197
  %v202 = vand.u32 2147483647, %v192
  %vm203 = vcmp.eq.f32.partialorder %v202, 8.507059e+37
  %v204 = vand.u32 %v192, 2147483648
  %v205 = vor.u32 1.1754944e-38, %v204
  %v206 = vsel %vm203, %v205, %v201
  %v207 = vmul.f32 1.0, %v206
  %v208 = vtanh.pop %v188
  %v209 = vmul.f32 %v207, %v154
  %211 = vrot.lane.b32.xlu0 %v208, 64
  %v212 = vpop.permute.xlu0 %211
  %v214 = vmul.f32 %v207, %v212
  %216 = vrot.lane.b32.xlu0 %v214, 32
  %v217 = vpop.permute.xlu0 %216
  %v219 = vadd.f32 %v209, %v217
  %v220 = vtanh.pop %v219
  %222 = vrot.lane.b32.xlu0 %v220, 64
  %v223 = vpop.permute.xlu0 %222
  %v225 = vmul.f32 %v207, %v223
  %s226 = scalar_lea.vmem %s0, 6
  %v227 = vld [vmem:[%s226] sm:$0x3]
  %229 = vrot.lane.b32.xlu0 %v225, 32
  %v230 = vpop.permute.xlu0 %229
  %v231 = vsel %vm34, %v230, 0
  %233 = vmatpush.msra.mxu0 0.0
  %234 = vmatpush.msra.mxu0 0.0
  %235 = vmatpush.msra.mxu0 0.0
  %236 = vmatpush.msra.mxu0 0.0
  %237 = vmatpush.msra.mxu0 0.0
  %238 = vmatpush.msra.mxu0 0.0
  %239 = vmatpush.msra.mxu0 0.0
  %240 = vmatpush.msra.mxu0 0.0
  %241 = vmatpush.msra.mxu0 0.0
  %242 = vmatpush.msra.mxu0 0.0
  %243 = vmatpush.msra.mxu0 0.0
  %244 = vmatpush.msra.mxu0 0.0
  %245 = vmatpush.msra.mxu0 %v26
  %246 = vmatpush.msra.mxu0 %v25
  %247 = vmatpush.msra.mxu0 %v24
  %248 = vmatpush.msra.mxu0 %v23
  %249 = vmatmul.f32.gmra.mxu0 %v231
  %v250 = vpop.f32.mrf.mxu0
  %v251 = vadd.f32 0.0, %v250
  %252 = vdwg.mxu0
  %v253 = vadd.f32 %v227, %v251
  %v254 = vxor.u32 %v253, 2147483648
  %v255 = vmul.f32 %v254, 1.442695
  %v256 = vpow.pop %v255
  %v257 = vadd.f32 %v256, 1.0
  %v258 = vrcp.pop %v257
  %v259 = vmul.f32 %v257, %v258
  %v260 = vsub.f32 1.0, %v259
  %v261 = vmul.f32 %v258, %v260
  %v262 = vadd.f32 %v258, %v261
  %vm263 = vweird.f32 %v257
  %vm264 = vweird.f32 %v258
  %vm265 = vmor %vm263, %vm264
  %v266 = vsel %vm265, %v258, %v262
  %v267 = vand.u32 2147483647, %v257
  %vm268 = vcmp.eq.f32.partialorder %v267, 8.507059e+37
  %v269 = vand.u32 %v257, 2147483648
  %v270 = vor.u32 1.1754944e-38, %v269
  %v271 = vsel %vm268, %v270, %v266
  %v272 = vmul.f32 1.0, %v271
  %v273 = vtanh.pop %v253
  %v274 = vmul.f32 %v272, %v219
  %276 = vrot.lane.b32.xlu0 %v273, 64
  %v277 = vpop.permute.xlu0 %276
  %v279 = vmul.f32 %v272, %v277
  %281 = vrot.lane.b32.xlu0 %v279, 32
  %v282 = vpop.permute.xlu0 %281
  %v284 = vadd.f32 %v274, %v282
  %v285 = vtanh.pop %v284
  %287 = vrot.lane.b32.xlu0 %v285, 64
  %v288 = vpop.permute.xlu0 %287
  %v290 = vmul.f32 %v272, %v288
  %s291 = scalar_lea.vmem %s0, 8
  %v292 = vld [vmem:[%s291] sm:$0x3]
  %294 = vrot.lane.b32.xlu0 %v290, 32
  %v295 = vpop.permute.xlu0 %294
  %v296 = vsel %vm34, %v295, 0
  %298 = vmatpush.msra.mxu0 0.0
  %299 = vmatpush.msra.mxu0 0.0
  %300 = vmatpush.msra.mxu0 0.0
  %301 = vmatpush.msra.mxu0 0.0
  %302 = vmatpush.msra.mxu0 0.0
  %303 = vmatpush.msra.mxu0 0.0
  %304 = vmatpush.msra.mxu0 0.0
  %305 = vmatpush.msra.mxu0 0.0
  %306 = vmatpush.msra.mxu0 0.0
  %307 = vmatpush.msra.mxu0 0.0
  %308 = vmatpush.msra.mxu0 0.0
  %309 = vmatpush.msra.mxu0 0.0
  %310 = vmatpush.msra.mxu0 %v26
  %311 = vmatpush.msra.mxu0 %v25
  %312 = vmatpush.msra.mxu0 %v24
  %313 = vmatpush.msra.mxu0 %v23
  %314 = vmatmul.f32.gmra.mxu0 %v296
  %v315 = vpop.f32.mrf.mxu0
  %v316 = vadd.f32 0.0, %v315
  %317 = vdwg.mxu0
  %v318 = vadd.f32 %v292, %v316
  %v319 = vxor.u32 %v318, 2147483648
  %v320 = vmul.f32 %v319, 1.442695
  %v321 = vpow.pop %v320
  %v322 = vadd.f32 %v321, 1.0
  %v323 = vrcp.pop %v322
  %v324 = vmul.f32 %v322, %v323
  %v325 = vsub.f32 1.0, %v324
  %v326 = vmul.f32 %v323, %v325
  %v327 = vadd.f32 %v323, %v326
  %vm328 = vweird.f32 %v322
  %vm329 = vweird.f32 %v323
  %vm330 = vmor %vm328, %vm329
  %v331 = vsel %vm330, %v323, %v327
  %v332 = vand.u32 2147483647, %v322
  %vm333 = vcmp.eq.f32.partialorder %v332, 8.507059e+37
  %v334 = vand.u32 %v322, 2147483648
  %v335 = vor.u32 1.1754944e-38, %v334
  %v336 = vsel %vm333, %v335, %v331
  %v337 = vmul.f32 1.0, %v336
  %v338 = vtanh.pop %v318
  %v339 = vmul.f32 %v337, %v284
  %341 = vrot.lane.b32.xlu0 %v338, 64
  %v342 = vpop.permute.xlu0 %341
  %v344 = vmul.f32 %v337, %v342
  %346 = vrot.lane.b32.xlu0 %v344, 32
  %v347 = vpop.permute.xlu0 %346
  %v349 = vadd.f32 %v339, %v347
  %v350 = vtanh.pop %v349
  %352 = vrot.lane.b32.xlu0 %v350, 64
  %v353 = vpop.permute.xlu0 %352
  %v355 = vmul.f32 %v337, %v353
  %s356 = scalar_lea.vmem %s0, 10
  %v357 = vld [vmem:[%s356] sm:$0x3]
  %359 = vrot.lane.b32.xlu0 %v355, 32
  %v360 = vpop.permute.xlu0 %359
  %v361 = vsel %vm34, %v360, 0
  %363 = vmatpush.msra.mxu0 0.0
  %364 = vmatpush.msra.mxu0 0.0
  %365 = vmatpush.msra.mxu0 0.0
  %366 = vmatpush.msra.mxu0 0.0
  %367 = vmatpush.msra.mxu0 0.0
  %368 = vmatpush.msra.mxu0 0.0
  %369 = vmatpush.msra.mxu0 0.0
  %370 = vmatpush.msra.mxu0 0.0
  %371 = vmatpush.msra.mxu0 0.0
  %372 = vmatpush.msra.mxu0 0.0
  %373 = vmatpush.msra.mxu0 0.0
  %374 = vmatpush.msra.mxu0 0.0
  %375 = vmatpush.msra.mxu0 %v26
  %376 = vmatpush.msra.mxu0 %v25
  %377 = vmatpush.msra.mxu0 %v24
  %378 = vmatpush.msra.mxu0 %v23
  %379 = vmatmul.f32.gmra.mxu0 %v361
  %v380 = vpop.f32.mrf.mxu0
  %v381 = vadd.f32 0.0, %v380
  %382 = vdwg.mxu0
  %v383 = vadd.f32 %v357, %v381
  %v384 = vxor.u32 %v383, 2147483648
  %v385 = vmul.f32 %v384, 1.442695
  %v386 = vpow.pop %v385
  %v387 = vadd.f32 %v386, 1.0
  %v388 = vrcp.pop %v387
  %v389 = vmul.f32 %v387, %v388
  %v390 = vsub.f32 1.0, %v389
  %v391 = vmul.f32 %v388, %v390
  %v392 = vadd.f32 %v388, %v391
  %vm393 = vweird.f32 %v387
  %vm394 = vweird.f32 %v388
  %vm395 = vmor %vm393, %vm394
  %v396 = vsel %vm395, %v388, %v392
  %v397 = vand.u32 2147483647, %v387
  %vm398 = vcmp.eq.f32.partialorder %v397, 8.507059e+37
  %v399 = vand.u32 %v387, 2147483648
  %v400 = vor.u32 1.1754944e-38, %v399
  %v401 = vsel %vm398, %v400, %v396
  %v402 = vmul.f32 1.0, %v401
  %v403 = vtanh.pop %v383
  %v404 = vmul.f32 %v402, %v349
  %406 = vrot.lane.b32.xlu0 %v403, 64
  %v407 = vpop.permute.xlu0 %406
  %v409 = vmul.f32 %v402, %v407
  %411 = vrot.lane.b32.xlu0 %v409, 32
  %v412 = vpop.permute.xlu0 %411
  %v414 = vadd.f32 %v404, %v412
  %v415 = vtanh.pop %v414
  %417 = vrot.lane.b32.xlu0 %v415, 64
  %v418 = vpop.permute.xlu0 %417
  %v420 = vmul.f32 %v402, %v418
  %s421 = scalar_lea.vmem %s0, 12
  %v422 = vld [vmem:[%s421] sm:$0x3]
  %424 = vrot.lane.b32.xlu0 %v420, 32
  %v425 = vpop.permute.xlu0 %424
  %v426 = vsel %vm34, %v425, 0
  %428 = vmatpush.msra.mxu0 0.0
  %429 = vmatpush.msra.mxu0 0.0
  %430 = vmatpush.msra.mxu0 0.0
  %431 = vmatpush.msra.mxu0 0.0
  %432 = vmatpush.msra.mxu0 0.0
  %433 = vmatpush.msra.mxu0 0.0
  %434 = vmatpush.msra.mxu0 0.0
  %435 = vmatpush.msra.mxu0 0.0
  %436 = vmatpush.msra.mxu0 0.0
  %437 = vmatpush.msra.mxu0 0.0
  %438 = vmatpush.msra.mxu0 0.0
  %439 = vmatpush.msra.mxu0 0.0
  %440 = vmatpush.msra.mxu0 %v26
  %441 = vmatpush.msra.mxu0 %v25
  %442 = vmatpush.msra.mxu0 %v24
  %443 = vmatpush.msra.mxu0 %v23
  %444 = vmatmul.f32.gmra.mxu0 %v426
  %v445 = vpop.f32.mrf.mxu0
  %v446 = vadd.f32 0.0, %v445
  %447 = vdwg.mxu0
  %v448 = vadd.f32 %v422, %v446
  %v449 = vxor.u32 %v448, 2147483648
  %v450 = vmul.f32 %v449, 1.442695
  %v451 = vpow.pop %v450
  %v452 = vadd.f32 %v451, 1.0
  %v453 = vrcp.pop %v452
  %v454 = vmul.f32 %v452, %v453
  %v455 = vsub.f32 1.0, %v454
  %v456 = vmul.f32 %v453, %v455
  %v457 = vadd.f32 %v453, %v456
  %vm458 = vweird.f32 %v452
  %vm459 = vweird.f32 %v453
  %vm460 = vmor %vm458, %vm459
  %v461 = vsel %vm460, %v453, %v457
  %v462 = vand.u32 2147483647, %v452
  %vm463 = vcmp.eq.f32.partialorder %v462, 8.507059e+37
  %v464 = vand.u32 %v452, 2147483648
  %v465 = vor.u32 1.1754944e-38, %v464
  %v466 = vsel %vm463, %v465, %v461
  %v467 = vmul.f32 1.0, %v466
  %v468 = vtanh.pop %v448
  %v469 = vmul.f32 %v467, %v414
  %471 = vrot.lane.b32.xlu0 %v468, 64
  %v472 = vpop.permute.xlu0 %471
  %v474 = vmul.f32 %v467, %v472
  %476 = vrot.lane.b32.xlu0 %v474, 32
  %v477 = vpop.permute.xlu0 %476
  %v479 = vadd.f32 %v469, %v477
  %v480 = vtanh.pop %v479
  %482 = vrot.lane.b32.xlu0 %v480, 64
  %v483 = vpop.permute.xlu0 %482
  %v485 = vmul.f32 %v467, %v483
  %s486 = scalar_lea.vmem %s0, 14
  %v487 = vld [vmem:[%s486] sm:$0x3]
  %489 = vrot.lane.b32.xlu0 %v485, 32
  %v490 = vpop.permute.xlu0 %489
  %v491 = vsel %vm34, %v490, 0
  %493 = vmatpush.msra.mxu0 0.0
  %494 = vmatpush.msra.mxu0 0.0
  %495 = vmatpush.msra.mxu0 0.0
  %496 = vmatpush.msra.mxu0 0.0
  %497 = vmatpush.msra.mxu0 0.0
  %498 = vmatpush.msra.mxu0 0.0
  %499 = vmatpush.msra.mxu0 0.0
  %500 = vmatpush.msra.mxu0 0.0
  %501 = vmatpush.msra.mxu0 0.0
  %502 = vmatpush.msra.mxu0 0.0
  %503 = vmatpush.msra.mxu0 0.0
  %504 = vmatpush.msra.mxu0 0.0
  %505 = vmatpush.msra.mxu0 %v26
  %506 = vmatpush.msra.mxu0 %v25
  %507 = vmatpush.msra.mxu0 %v24
  %508 = vmatpush.msra.mxu0 %v23
  %509 = vmatmul.f32.gmra.mxu0 %v491
  %v510 = vpop.f32.mrf.mxu0
  %v511 = vadd.f32 0.0, %v510
  %512 = vdwg.mxu0
  %v513 = vadd.f32 %v487, %v511
  %v514 = vxor.u32 %v513, 2147483648
  %v515 = vmul.f32 %v514, 1.442695
  %v516 = vpow.pop %v515
  %v517 = vadd.f32 %v516, 1.0
  %v518 = vrcp.pop %v517
  %v519 = vmul.f32 %v517, %v518
  %v520 = vsub.f32 1.0, %v519
  %v521 = vmul.f32 %v518, %v520
  %v522 = vadd.f32 %v518, %v521
  %vm523 = vweird.f32 %v517
  %vm524 = vweird.f32 %v518
  %vm525 = vmor %vm523, %vm524
  %v526 = vsel %vm525, %v518, %v522
  %v527 = vand.u32 2147483647, %v517
  %vm528 = vcmp.eq.f32.partialorder %v527, 8.507059e+37
  %v529 = vand.u32 %v517, 2147483648
  %v530 = vor.u32 1.1754944e-38, %v529
  %v531 = vsel %vm528, %v530, %v526
  %v532 = vmul.f32 1.0, %v531
  %v533 = vtanh.pop %v513
  %v534 = vmul.f32 %v532, %v479
  %536 = vrot.lane.b32.xlu0 %v533, 64
  %v537 = vpop.permute.xlu0 %536
  %v539 = vmul.f32 %v532, %v537
  %541 = vrot.lane.b32.xlu0 %v539, 32
  %v542 = vpop.permute.xlu0 %541
  %v544 = vadd.f32 %v534, %v542
  %v545 = vtanh.pop %v544
  %547 = vrot.lane.b32.xlu0 %v545, 64
  %v548 = vpop.permute.xlu0 %547
  %v550 = vmul.f32 %v532, %v548
  %v551 = vld [vmem:[%s1] sm:$0x3]
  %v552 = vld [vmem:[%s2] sm:$0x3]
  %554 = vset.pattern.permute.xlu0 0
  %555 = vperm.xlu0 %554, %v552
  %v556 = vpop.permute.xlu0 %555
  %v558 = vperm.slane %v27, 2
  %v559 = vmul.f32 %v556, %v558
  %v560 = vperm.slane %v27, 3
  %v561 = vadd.f32 %v559, %v560
  %562 = vset.pattern.permute.xlu0 1
  %563 = vperm.xlu0 %562, %v552
  %v564 = vpop.permute.xlu0 %563
  %v566 = vmul.f32 %v564, %v558
  %v567 = vadd.f32 %v566, %v560
  %568 = vset.pattern.permute.xlu0 2
  %569 = vperm.xlu0 %568, %v552
  %v570 = vpop.permute.xlu0 %569
  %v572 = vmul.f32 %v570, %v558
  %v573 = vadd.f32 %v572, %v560
  %574 = vset.pattern.permute.xlu0 3
  %575 = vperm.xlu0 %574, %v552
  %v576 = vpop.permute.xlu0 %575
  %v578 = vmul.f32 %v576, %v558
  %v579 = vadd.f32 %v578, %v560
  %581 = vset.pattern.permute.xlu0 0
  %582 = vperm.xlu0 %581, %v551
  %v583 = vpop.permute.xlu0 %582
  %v585 = vperm.slane %v27, 0
  %v586 = vmul.f32 %v583, %v585
  %587 = vset.pattern.permute.xlu0 1
  %588 = vperm.xlu0 %587, %v551
  %v589 = vpop.permute.xlu0 %588
  %v591 = vperm.slane %v27, 1
  %v592 = vmul.f32 %v589, %v591
  %v593 = vadd.f32 %v586, %v592
  %v594 = vadd.f32 %v593, %v561
  %596 = vrot.lane.b32.xlu0 %v550, 32
  %v597 = vpop.permute.xlu0 %596
  %v598 = vsel %vm34, %v597, 0
  %600 = vmatpush.msra.mxu0 0.0
  %601 = vmatpush.msra.mxu0 0.0
  %602 = vmatpush.msra.mxu0 0.0
  %603 = vmatpush.msra.mxu0 0.0
  %604 = vmatpush.msra.mxu0 0.0
  %605 = vmatpush.msra.mxu0 0.0
  %606 = vmatpush.msra.mxu0 0.0
  %607 = vmatpush.msra.mxu0 0.0
  %608 = vmatpush.msra.mxu0 0.0
  %609 = vmatpush.msra.mxu0 0.0
  %610 = vmatpush.msra.mxu0 0.0
  %611 = vmatpush.msra.mxu0 0.0
  %612 = vmatpush.msra.mxu0 %v26
  %613 = vmatpush.msra.mxu0 %v25
  %614 = vmatpush.msra.mxu0 %v24
  %615 = vmatpush.msra.mxu0 %v23
  %616 = vmatmul.f32.gmra.mxu0 %v598
  %v617 = vpop.f32.mrf.mxu0
  %v618 = vadd.f32 0.0, %v617
  %619 = vdwg.mxu0
  %v620 = vadd.f32 %v594, %v618
  %v621 = vxor.u32 %v620, 2147483648
  %v622 = vmul.f32 %v621, 1.442695
  %v623 = vpow.pop %v622
  %v624 = vadd.f32 %v623, 1.0
  %v625 = vrcp.pop %v624
  %v626 = vmul.f32 %v624, %v625
  %v627 = vsub.f32 1.0, %v626
  %v628 = vmul.f32 %v625, %v627
  %v629 = vadd.f32 %v625, %v628
  %vm630 = vweird.f32 %v624
  %vm631 = vweird.f32 %v625
  %vm632 = vmor %vm630, %vm631
  %v633 = vsel %vm632, %v625, %v629
  %v634 = vand.u32 2147483647, %v624
  %vm635 = vcmp.eq.f32.partialorder %v634, 8.507059e+37
  %v636 = vand.u32 %v624, 2147483648
  %v637 = vor.u32 1.1754944e-38, %v636
  %v638 = vsel %vm635, %v637, %v633
  %v639 = vmul.f32 1.0, %v638
  %v640 = vtanh.pop %v620
  %v641 = vmul.f32 %v639, %v544
  %643 = vrot.lane.b32.xlu0 %v640, 64
  %v644 = vpop.permute.xlu0 %643
  %v646 = vmul.f32 %v639, %v644
  %648 = vrot.lane.b32.xlu0 %v646, 32
  %v649 = vpop.permute.xlu0 %648
  %v651 = vadd.f32 %v641, %v649
  %v652 = vtanh.pop %v651
  %654 = vrot.lane.b32.xlu0 %v652, 64
  %v655 = vpop.permute.xlu0 %654
  %v657 = vmul.f32 %v639, %v655
  %v658 = vperm.slane %v32, 0
  %660 = vrot.lane.b32.xlu0 %v657, 32
  %v661 = vpop.permute.xlu0 %660
  %v662 = vsel %vm34, %v661, 0
  %664 = vmatpush.msra.mxu0 0.0
  %665 = vmatpush.msra.mxu0 0.0
  %666 = vmatpush.msra.mxu0 0.0
  %667 = vmatpush.msra.mxu0 0.0
  %668 = vmatpush.msra.mxu0 0.0
  %669 = vmatpush.msra.mxu0 0.0
  %670 = vmatpush.msra.mxu0 0.0
  %671 = vmatpush.msra.mxu0 0.0
  %672 = vmatpush.msra.mxu0 0.0
  %673 = vmatpush.msra.mxu0 0.0
  %674 = vmatpush.msra.mxu0 0.0
  %675 = vmatpush.msra.mxu0 0.0
  %676 = vmatpush.msra.mxu0 %v31
  %677 = vmatpush.msra.mxu0 %v30
  %678 = vmatpush.msra.mxu0 %v29
  %679 = vmatpush.msra.mxu0 %v28
  %680 = vmatmul.f32.gmra.mxu0 %v662
  %v681 = vpop.f32.mrf.mxu0
  %v682 = vadd.f32 %v658, %v681
  %683 = vdwg.mxu0
  %685 = vrot.lane.b32.xlu0 %v682, 126
  %v686 = vpop.permute.xlu0 %685
  %v688 = vmul.f32 %v682, %v686
  %v689 = vadd.f32 %v551, %v688
  %vm690 = vcmp.gt.f32.partialorder %v689, 1.0
  %vm691 = vcmp.lt.f32.partialorder %v689, 0.0
  %v692 = vsub.f32 %v689, 1.0
  %v693 = vsub.f32 1.0, %v692
  %v694 = vsub.f32 0.0, %v689
  %v695 = vsel %vm691, %v694, %v689
  %v696 = vsel %vm690, %v693, %v695
  %vm697 = vmor %vm690, %vm691
  %v698 = vsub.f32 %v689, 0.5
  %700 = vrot.lane.b32.xlu0 %v698, 1
  %v701 = vpop.permute.xlu0 %700
  %704 = vrot.lane.b32.xlu0 %v689, 1
  %v705 = vpop.permute.xlu0 %704
  %v707 = vsel %vm697, %v701, %v705
  %vm708 = vcmp.ge.f32.partialorder %v707, 0.0
  %v709 = vfloor.f32 %v707
  %v710 = vceil.f32 %v707
  %v711 = vsel %vm708, %v709, %v710
  %v712 = vsub.f32 %v707, %v711
  %714 = vset.pattern.permute.xlu0 1
  %715 = vperm.xlu0 %714, %v712
  %v716 = vpop.permute.xlu0 %715
  %v718 = vmul.f32 %v716, %v585
  %720 = vset.pattern.permute.xlu0 1
  %721 = vperm.xlu0 %720, %v696
  %v722 = vpop.permute.xlu0 %721
  %v724 = vmul.f32 %v722, %v591
  %v725 = vadd.f32 %v718, %v724
  %v726 = vadd.f32 %v725, %v567
  %727 = vmatpush.msra.mxu0 0.0
  %728 = vmatpush.msra.mxu0 0.0
  %729 = vmatpush.msra.mxu0 0.0
  %730 = vmatpush.msra.mxu0 0.0
  %731 = vmatpush.msra.mxu0 0.0
  %732 = vmatpush.msra.mxu0 0.0
  %733 = vmatpush.msra.mxu0 0.0
  %734 = vmatpush.msra.mxu0 0.0
  %735 = vmatpush.msra.mxu0 0.0
  %736 = vmatpush.msra.mxu0 0.0
  %737 = vmatpush.msra.mxu0 0.0
  %738 = vmatpush.msra.mxu0 0.0
  %739 = vmatpush.msra.mxu0 %v26
  %740 = vmatpush.msra.mxu0 %v25
  %741 = vmatpush.msra.mxu0 %v24
  %742 = vmatpush.msra.mxu0 %v23
  %743 = vmatmul.f32.gmra.mxu0 %v662
  %v744 = vpop.f32.mrf.mxu0
  %v745 = vadd.f32 0.0, %v744
  %746 = vdwg.mxu0
  %v747 = vadd.f32 %v726, %v745
  %v748 = vxor.u32 %v747, 2147483648
  %v749 = vmul.f32 %v748, 1.442695
  %v750 = vpow.pop %v749
  %v751 = vadd.f32 %v750, 1.0
  %v752 = vrcp.pop %v751
  %v753 = vmul.f32 %v751, %v752
  %v754 = vsub.f32 1.0, %v753
  %v755 = vmul.f32 %v752, %v754
  %v756 = vadd.f32 %v752, %v755
  %vm757 = vweird.f32 %v751
  %vm758 = vweird.f32 %v752
  %vm759 = vmor %vm757, %vm758
  %v760 = vsel %vm759, %v752, %v756
  %v761 = vand.u32 2147483647, %v751
  %vm762 = vcmp.eq.f32.partialorder %v761, 8.507059e+37
  %v763 = vand.u32 %v751, 2147483648
  %v764 = vor.u32 1.1754944e-38, %v763
  %v765 = vsel %vm762, %v764, %v760
  %v766 = vmul.f32 1.0, %v765
  %v767 = vtanh.pop %v747
  %v768 = vmul.f32 %v766, %v651
  %770 = vrot.lane.b32.xlu0 %v767, 64
  %v771 = vpop.permute.xlu0 %770
  %v773 = vmul.f32 %v766, %v771
  %775 = vrot.lane.b32.xlu0 %v773, 32
  %v776 = vpop.permute.xlu0 %775
  %v778 = vadd.f32 %v768, %v776
  %v779 = vtanh.pop %v778
  %781 = vrot.lane.b32.xlu0 %v779, 64
  %v782 = vpop.permute.xlu0 %781
  %v784 = vmul.f32 %v766, %v782
  %786 = vrot.lane.b32.xlu0 %v784, 32
  %v787 = vpop.permute.xlu0 %786
  %v788 = vsel %vm34, %v787, 0
  %790 = vmatpush.msra.mxu0 0.0
  %791 = vmatpush.msra.mxu0 0.0
  %792 = vmatpush.msra.mxu0 0.0
  %793 = vmatpush.msra.mxu0 0.0
  %794 = vmatpush.msra.mxu0 0.0
  %795 = vmatpush.msra.mxu0 0.0
  %796 = vmatpush.msra.mxu0 0.0
  %797 = vmatpush.msra.mxu0 0.0
  %798 = vmatpush.msra.mxu0 0.0
  %799 = vmatpush.msra.mxu0 0.0
  %800 = vmatpush.msra.mxu0 0.0
  %801 = vmatpush.msra.mxu0 0.0
  %802 = vmatpush.msra.mxu0 %v31
  %803 = vmatpush.msra.mxu0 %v30
  %804 = vmatpush.msra.mxu0 %v29
  %805 = vmatpush.msra.mxu0 %v28
  %806 = vmatmul.f32.gmra.mxu0 %v788
  %v807 = vpop.f32.mrf.mxu0
  %v808 = vadd.f32 %v658, %v807
  %809 = vdwg.mxu0
  %811 = vrot.lane.b32.xlu0 %v808, 126
  %v812 = vpop.permute.xlu0 %811
  %v814 = vmul.f32 %v808, %v812
  %816 = vrot.lane.b32.xlu0 %v814, 1
  %v817 = vpop.permute.xlu0 %816
  %v819 = vadd.f32 %v712, %v817
  %v820 = vadd.f32 %v696, %v814
  %vm821 = vcmp.gt.f32.partialorder %v820, 1.0
  %vm822 = vcmp.lt.f32.partialorder %v820, 0.0
  %v823 = vsub.f32 %v820, 1.0
  %v824 = vsub.f32 1.0, %v823
  %v825 = vsub.f32 0.0, %v820
  %v826 = vsel %vm822, %v825, %v820
  %v827 = vsel %vm821, %v824, %v826
  %vm828 = vmor %vm821, %vm822
  %v829 = vsub.f32 %v819, 0.5
  %v830 = vsel %vm828, %v829, %v819
  %vm831 = vcmp.ge.f32.partialorder %v830, 0.0
  %v832 = vfloor.f32 %v830
  %v833 = vceil.f32 %v830
  %v834 = vsel %vm831, %v832, %v833
  %v835 = vsub.f32 %v830, %v834
  %837 = vset.pattern.permute.xlu0 1
  %838 = vperm.xlu0 %837, %v835
  %v839 = vpop.permute.xlu0 %838
  %v841 = vmul.f32 %v839, %v585
  %843 = vset.pattern.permute.xlu0 1
  %844 = vperm.xlu0 %843, %v827
  %v845 = vpop.permute.xlu0 %844
  %v847 = vmul.f32 %v845, %v591
  %v848 = vadd.f32 %v841, %v847
  %v849 = vadd.f32 %v848, %v573
  %850 = vmatpush.msra.mxu0 0.0
  %851 = vmatpush.msra.mxu0 0.0
  %852 = vmatpush.msra.mxu0 0.0
  %853 = vmatpush.msra.mxu0 0.0
  %854 = vmatpush.msra.mxu0 0.0
  %855 = vmatpush.msra.mxu0 0.0
  %856 = vmatpush.msra.mxu0 0.0
  %857 = vmatpush.msra.mxu0 0.0
  %858 = vmatpush.msra.mxu0 0.0
  %859 = vmatpush.msra.mxu0 0.0
  %860 = vmatpush.msra.mxu0 0.0
  %861 = vmatpush.msra.mxu0 0.0
  %862 = vmatpush.msra.mxu0 %v26
  %863 = vmatpush.msra.mxu0 %v25
  %864 = vmatpush.msra.mxu0 %v24
  %865 = vmatpush.msra.mxu0 %v23
  %866 = vmatmul.f32.gmra.mxu0 %v788
  %v867 = vpop.f32.mrf.mxu0
  %v868 = vadd.f32 0.0, %v867
  %869 = vdwg.mxu0
  %v870 = vadd.f32 %v849, %v868
  %v871 = vxor.u32 %v870, 2147483648
  %v872 = vmul.f32 %v871, 1.442695
  %v873 = vpow.pop %v872
  %v874 = vadd.f32 %v873, 1.0
  %v875 = vrcp.pop %v874
  %v876 = vmul.f32 %v874, %v875
  %v877 = vsub.f32 1.0, %v876
  %v878 = vmul.f32 %v875, %v877
  %v879 = vadd.f32 %v875, %v878
  %vm880 = vweird.f32 %v874
  %vm881 = vweird.f32 %v875
  %vm882 = vmor %vm880, %vm881
  %v883 = vsel %vm882, %v875, %v879
  %v884 = vand.u32 2147483647, %v874
  %vm885 = vcmp.eq.f32.partialorder %v884, 8.507059e+37
  %v886 = vand.u32 %v874, 2147483648
  %v887 = vor.u32 1.1754944e-38, %v886
  %v888 = vsel %vm885, %v887, %v883
  %v889 = vmul.f32 1.0, %v888
  %v890 = vtanh.pop %v870
  %v891 = vmul.f32 %v889, %v778
  %893 = vrot.lane.b32.xlu0 %v890, 64
  %v894 = vpop.permute.xlu0 %893
  %v896 = vmul.f32 %v889, %v894
  %898 = vrot.lane.b32.xlu0 %v896, 32
  %v899 = vpop.permute.xlu0 %898
  %v901 = vadd.f32 %v891, %v899
  %v902 = vtanh.pop %v901
  %904 = vrot.lane.b32.xlu0 %v902, 64
  %v905 = vpop.permute.xlu0 %904
  %v907 = vmul.f32 %v889, %v905
  %909 = vrot.lane.b32.xlu0 %v907, 32
  %v910 = vpop.permute.xlu0 %909
  %v911 = vsel %vm34, %v910, 0
  %913 = vmatpush.msra.mxu0 0.0
  %914 = vmatpush.msra.mxu0 0.0
  %915 = vmatpush.msra.mxu0 0.0
  %916 = vmatpush.msra.mxu0 0.0
  %917 = vmatpush.msra.mxu0 0.0
  %918 = vmatpush.msra.mxu0 0.0
  %919 = vmatpush.msra.mxu0 0.0
  %920 = vmatpush.msra.mxu0 0.0
  %921 = vmatpush.msra.mxu0 0.0
  %922 = vmatpush.msra.mxu0 0.0
  %923 = vmatpush.msra.mxu0 0.0
  %924 = vmatpush.msra.mxu0 0.0
  %925 = vmatpush.msra.mxu0 %v31
  %926 = vmatpush.msra.mxu0 %v30
  %927 = vmatpush.msra.mxu0 %v29
  %928 = vmatpush.msra.mxu0 %v28
  %929 = vmatmul.f32.gmra.mxu0 %v911
  %v930 = vpop.f32.mrf.mxu0
  %v931 = vadd.f32 %v658, %v930
  %932 = vdwg.mxu0
  %934 = vrot.lane.b32.xlu0 %v931, 126
  %v935 = vpop.permute.xlu0 %934
  %v937 = vmul.f32 %v931, %v935
  %939 = vrot.lane.b32.xlu0 %v937, 1
  %v940 = vpop.permute.xlu0 %939
  %v942 = vadd.f32 %v835, %v940
  %v943 = vadd.f32 %v827, %v937
  %vm944 = vcmp.gt.f32.partialorder %v943, 1.0
  %vm945 = vcmp.lt.f32.partialorder %v943, 0.0
  %v946 = vsub.f32 %v943, 1.0
  %v947 = vsub.f32 1.0, %v946
  %v948 = vsub.f32 0.0, %v943
  %v949 = vsel %vm945, %v948, %v943
  %v950 = vsel %vm944, %v947, %v949
  %vm951 = vmor %vm944, %vm945
  %v952 = vsub.f32 %v942, 0.5
  %v953 = vsel %vm951, %v952, %v942
  %vm954 = vcmp.ge.f32.partialorder %v953, 0.0
  %v955 = vfloor.f32 %v953
  %v956 = vceil.f32 %v953
  %v957 = vsel %vm954, %v955, %v956
  %v958 = vsub.f32 %v953, %v957
  %960 = vset.pattern.permute.xlu0 1
  %961 = vperm.xlu0 %960, %v958
  %v962 = vpop.permute.xlu0 %961
  %v964 = vmul.f32 %v962, %v585
  %966 = vset.pattern.permute.xlu0 1
  %967 = vperm.xlu0 %966, %v950
  %v968 = vpop.permute.xlu0 %967
  %v970 = vmul.f32 %v968, %v591
  %v971 = vadd.f32 %v964, %v970
  %v972 = vadd.f32 %v971, %v579
  %973 = vmatpush.msra.mxu0 0.0
  %974 = vmatpush.msra.mxu0 0.0
  %975 = vmatpush.msra.mxu0 0.0
  %976 = vmatpush.msra.mxu0 0.0
  %977 = vmatpush.msra.mxu0 0.0
  %978 = vmatpush.msra.mxu0 0.0
  %979 = vmatpush.msra.mxu0 0.0
  %980 = vmatpush.msra.mxu0 0.0
  %981 = vmatpush.msra.mxu0 0.0
  %982 = vmatpush.msra.mxu0 0.0
  %983 = vmatpush.msra.mxu0 0.0
  %984 = vmatpush.msra.mxu0 0.0
  %985 = vmatpush.msra.mxu0 %v26
  %986 = vmatpush.msra.mxu0 %v25
  %987 = vmatpush.msra.mxu0 %v24
  %988 = vmatpush.msra.mxu0 %v23
  %989 = vmatmul.f32.gmra.mxu0 %v911
  %v990 = vpop.f32.mrf.mxu0
  %v991 = vadd.f32 0.0, %v990
  %992 = vdwg.mxu0
  %v993 = vadd.f32 %v972, %v991
  %v994 = vxor.u32 %v993, 2147483648
  %v995 = vmul.f32 %v994, 1.442695
  %v996 = vpow.pop %v995
  %v997 = vadd.f32 %v996, 1.0
  %v998 = vrcp.pop %v997
  %v999 = vmul.f32 %v997, %v998
  %v1000 = vsub.f32 1.0, %v999
  %v1001 = vmul.f32 %v998, %v1000
  %v1002 = vadd.f32 %v998, %v1001
  %vm1003 = vweird.f32 %v997
  %vm1004 = vweird.f32 %v998
  %vm1005 = vmor %vm1003, %vm1004
  %v1006 = vsel %vm1005, %v998, %v1002
  %v1007 = vand.u32 2147483647, %v997
  %vm1008 = vcmp.eq.f32.partialorder %v1007, 8.507059e+37
  %v1009 = vand.u32 %v997, 2147483648
  %v1010 = vor.u32 1.1754944e-38, %v1009
  %v1011 = vsel %vm1008, %v1010, %v1006
  %v1012 = vmul.f32 1.0, %v1011
  %v1013 = vtanh.pop %v993
  %v1014 = vmul.f32 %v1012, %v901
  %1016 = vrot.lane.b32.xlu0 %v1013, 64
  %v1017 = vpop.permute.xlu0 %1016
  %v1019 = vmul.f32 %v1012, %v1017
  %1021 = vrot.lane.b32.xlu0 %v1019, 32
  %v1022 = vpop.permute.xlu0 %1021
  %v1024 = vadd.f32 %v1014, %v1022
  %v1025 = vtanh.pop %v1024
  %1027 = vrot.lane.b32.xlu0 %v1025, 64
  %v1028 = vpop.permute.xlu0 %1027
  %v1030 = vmul.f32 %v1012, %v1028
  %1032 = vrot.lane.b32.xlu0 %v1030, 32
  %v1033 = vpop.permute.xlu0 %1032
  %v1034 = vsel %vm34, %v1033, 0
  %1036 = vmatpush.msra.mxu0 0.0
  %1037 = vmatpush.msra.mxu0 0.0
  %1038 = vmatpush.msra.mxu0 0.0
  %1039 = vmatpush.msra.mxu0 0.0
  %1040 = vmatpush.msra.mxu0 0.0
  %1041 = vmatpush.msra.mxu0 0.0
  %1042 = vmatpush.msra.mxu0 0.0
  %1043 = vmatpush.msra.mxu0 0.0
  %1044 = vmatpush.msra.mxu0 0.0
  %1045 = vmatpush.msra.mxu0 0.0
  %1046 = vmatpush.msra.mxu0 0.0
  %1047 = vmatpush.msra.mxu0 0.0
  %1048 = vmatpush.msra.mxu0 %v31
  %1049 = vmatpush.msra.mxu0 %v30
  %1050 = vmatpush.msra.mxu0 %v29
  %1051 = vmatpush.msra.mxu0 %v28
  %1052 = vmatmul.f32.gmra.mxu0 %v1034
  %v1053 = vpop.f32.mrf.mxu0
  %v1054 = vadd.f32 %v658, %v1053
  %1055 = vdwg.mxu0
  %1057 = vrot.lane.b32.xlu0 %v1054, 126
  %v1058 = vpop.permute.xlu0 %1057
  %v1060 = vmul.f32 %v1054, %v1058
  %1062 = vrot.lane.b32.xlu0 %v1060, 1
  %v1063 = vpop.permute.xlu0 %1062
  %v1065 = vadd.f32 %v958, %v1063
  %v1066 = vadd.f32 %v950, %v1060
  %vm1067 = vcmp.gt.f32.partialorder %v1066, 1.0
  %vm1068 = vcmp.lt.f32.partialorder %v1066, 0.0
  %v1069 = vsub.f32 %v1066, 1.0
  %v1070 = vsub.f32 1.0, %v1069
  %v1071 = vsub.f32 0.0, %v1066
  %v1072 = vsel %vm1068, %v1071, %v1066
  %v1073 = vsel %vm1067, %v1070, %v1072
  %vm1074 = vmor %vm1067, %vm1068
  %v1075 = vsub.f32 %v1065, 0.5
  %v1076 = vsel %vm1074, %v1075, %v1065
  %vm1077 = vcmp.ge.f32.partialorder %v1076, 0.0
  %v1078 = vfloor.f32 %v1076
  %v1079 = vceil.f32 %v1076
  %v1080 = vsel %vm1077, %v1078, %v1079
  %v1081 = vsub.f32 %v1076, %v1080
  %1082 = vrot.lane.b32.xlu0 %v712, 127
  %v1083 = vpop.permute.xlu0 %1082
  %1085 = vrot.lane.b32.xlu0 %v835, 1
  %v1086 = vpop.permute.xlu0 %1085
  %1088 = vrot.lane.b32.xlu0 %v827, 2
  %v1089 = vpop.permute.xlu0 %1088
  %1091 = vrot.lane.b32.xlu0 %v958, 3
  %v1092 = vpop.permute.xlu0 %1091
  %1094 = vrot.lane.b32.xlu0 %v950, 4
  %v1095 = vpop.permute.xlu0 %1094
  %1098 = vrot.lane.b32.xlu0 %v1081, 5
  %v1099 = vpop.permute.xlu0 %1098
  %1102 = vrot.lane.b32.xlu0 %v1073, 6
  %v1103 = vpop.permute.xlu0 %1102
  %vm1105 = vcmask 7168
  %v1106 = vsel %vm1105, %v1083, %v696
  %vm1107 = vcmask 15360
  %v1108 = vsel %vm1107, %v1106, %v1086
  %vm1109 = vcmask 23552
  %v1110 = vsel %vm1109, %v1108, %v1089
  %vm1111 = vcmask 31744
  %v1112 = vsel %vm1111, %v1110, %v1092
  %vm1113 = vcmask 39936
  %v1114 = vsel %vm1113, %v1112, %v1095
  %vm1115 = vcmask 48128
  %v1116 = vsel %vm1115, %v1114, %v1099
  %vm1117 = vcmask 56320
  %v1118 = vsel %vm1117, %v1116, %v1103
  %vm1119 = vcmask 58368
  %1120 = vst.msk [vmem:[%s6] sm:$0x3] %vm1119, %v1118
  // Predicated region
  $region26: #{track_pos_forward.1} parent=0 // pred_check
    _
  $region27: #{track_pos_forward.1} parent=0 // pred_check_branch
    %1122 = sbr.rel (0) target = $region29
  $region28: #{track_pos_forward.1} parent=0 // pred_region
    _
  $region29: #{track_pos_forward.1} parent=0 // pred_fallthru
    _
  // Predicated region
  $region30: #{track_pos_forward.1} parent=0 // pred_check
    _
  $region31: #{track_pos_forward.1} parent=0 // pred_check_branch
    %1124 = sbr.rel (0) target = $region33
  $region32: #{track_pos_forward.1} parent=0 // pred_region
    _
  $region33: #{track_pos_forward.1} parent=0 // pred_fallthru
    _

</llo_original>
